<compile_context>
chip_gen: v7x
topology: tpu7x:2x2x1
jax: 0.10.0
libtpu: 0.0.40
codegen_flags: <defaults>
</compile_context>

<pallas_src>
import functools
from functools import reduce
from operator import mul

import numpy as np
import jax
import jax.numpy as jnp
from jax.experimental import pallas as pl
from jax.experimental.pallas import tpu as pltpu


_NEG_INF = -1e30                 # additive mask for excluded (self-frame) keys
_MXU_DTYPE = jnp.bfloat16        # MXU operand dtype (accumulation stays f32)


def _vmem_limit_bytes():
    """75% of the detected per-core VMEM capacity (conservative fallback)."""
    cap = 64 * 1024 * 1024       # safe default: v7x has 64 MiB per TensorCore
    try:
        info = pltpu.get_tpu_info()
        cap = int(getattr(info, "vmem_capacity_bytes", cap))
    except Exception:
        pass
    return (cap * 3) // 4


def _estimate_vmem_bytes(bb, N, C, h, act_bytes, param_bytes, bias_bytes):
    """Rough per-grid-step VMEM footprint of the fused kernel."""
    io = 2 * 2 * bb * N * C * act_bytes          # x + out blocks, double-buffered
    scratch = bb * N * C * 4                     # f32 attention accumulator
    qkv = bb * N * 3 * C * (4 + 2)               # f32 matmul result + bf16 copy
    scores = 2 * bb * N * N * 4                  # s / p (per-head, with slack)
    weights = (3 * C * C + C * C + C) * param_bytes
    bias = h * N * N * bias_bytes
    return io + scratch + qkv + scores + weights + bias


def _pick_bb(B_, N, C, h, act_bytes, param_bytes, bias_bytes, budget):
    """Largest divisor of B_ fitting the budget, keeping >= 2 grid steps."""
    cap = B_ if B_ < 2 else B_ // 2              # megacore: keep >=2 grid steps
    best = 1
    for d in range(1, cap + 1):
        if B_ % d == 0 and _estimate_vmem_bytes(
                d, N, C, h, act_bytes, param_bytes, bias_bytes) <= budget:
            best = d
    return best


# ------------------------------ Pallas kernel -------------------------------

def _fused_attn_kernel(x_ref, qkvw_ref, bias_ref, pw_ref, pb_ref, o_ref,
                       attn_scr, *, num_heads, head_dim, dim):
    # x_ref    : (BB, N, C)   window tokens, channels lane-dense
    # qkvw_ref : (C, 3C)      fused [q*scale | k | v] projection weights (VMEM-resident)
    # bias_ref : (h, N, N)    rel-pos bias with -1e30 on self-frame key columns (VMEM-resident)
    # pw_ref   : (C, C)       output projection weights (VMEM-resident)
    # pb_ref   : (1, C)       output projection bias
    # o_ref    : (BB, N, C)   final (projected) output, lane-dense full-C store
    # attn_scr : (BB, N, C)   f32 VMEM scratch for per-head PV results
    BB, N, _ = x_ref.shape

    # Fused q/kv projection in one MXU pass (qkv_bias=False -> no bias add).
    x2 = x_ref[...].reshape(BB * N, dim).astype(_MXU_DTYPE)
    qkv = jnp.dot(x2, qkvw_ref[...].astype(_MXU_DTYPE),
                  preferred_element_type=jnp.float32)
    qkv = qkv.astype(_MXU_DTYPE).reshape(BB, N, 3 * dim)

    bias = bias_ref[...].astype(jnp.float32)     # softmax math in f32

    # TODO(synk): for realistic configs, padding C / head boundaries to 128
    # lanes would make the per-head slices below fully lane-aligned.
    for h in range(num_heads):                   # static unroll; num_heads is small
        lo = h * head_dim
        qh = qkv[:, :, lo:lo + head_dim]                       # (BB, N, hd)
        kh = qkv[:, :, dim + lo:dim + lo + head_dim]           # (BB, N, hd)
        vh = qkv[:, :, 2 * dim + lo:2 * dim + lo + head_dim]   # (BB, N, hd)
        s = jnp.einsum("bqd,bkd->bqk", qh, kh,
                       preferred_element_type=jnp.float32)
        s = s + bias[h][None]                    # mask applied BEFORE the row max
        s = s - jnp.max(s, axis=-1, keepdims=True)
        p = jnp.exp(s)
        p = p * pl.reciprocal(jnp.sum(p, axis=-1, keepdims=True), approx=True)
        attn_scr[:, :, lo:lo + head_dim] = jnp.einsum(
            "bqk,bkd->bqd", p.astype(_MXU_DTYPE), vh,
            preferred_element_type=jnp.float32)

    # Output projection fused in (no HBM round trip of attn_out).
    a2 = attn_scr[...].reshape(BB * N, dim).astype(_MXU_DTYPE)
    y2 = jnp.dot(a2, pw_ref[...].astype(_MXU_DTYPE),
                 preferred_element_type=jnp.float32)
    y2 = y2 + pb_ref[...].astype(jnp.float32)
    o_ref[...] = y2.reshape(BB, N, dim).astype(o_ref.dtype)


# ----------------------------- Host-side glue --------------------------------

def get_position_index(window_size):
    """Numpy replica of rWindowAttention.get_position_index."""
    D, H, W = window_size
    coords = np.stack(
        np.meshgrid(np.arange(D), np.arange(H), np.arange(W), indexing="ij"))
    coords_flatten = coords.reshape(3, -1)
    relative_coords = coords_flatten[:, :, None] - coords_flatten[:, None, :]
    relative_coords = relative_coords.transpose(1, 2, 0).copy()
    relative_coords[:, :, 0] += D - 1
    relative_coords[:, :, 1] += H - 1
    relative_coords[:, :, 2] += W - 1
    relative_coords[:, :, 0] *= (2 * H - 1) * (2 * W - 1)
    relative_coords[:, :, 1] *= 2 * W - 1
    return relative_coords.sum(-1).astype(np.int32)  # (N, N)


def init_params(key, dim, window_size, num_heads, dtype=jnp.float32):
    D, H, W = window_size
    L = (2 * D - 1) * (2 * H - 1) * (2 * W - 1)
    k0, k1, k2, k3, k4 = jax.random.split(key, 5)
    table = jnp.clip(
        0.02 * jax.random.normal(k0, (L, num_heads), dtype), -0.04, 0.04)
    return {
        "relative_position_bias_table": table,
        "relative_position_index": get_position_index(window_size),  # np int32
        # Stored as (in, out) so forward is x @ W (+ b); same math as torch Linear.
        "q_w": 0.05 * jax.random.normal(k1, (dim, dim), dtype),
        "kv_w": 0.05 * jax.random.normal(k2, (dim, 2 * dim), dtype),
        "proj_w": 0.05 * jax.random.normal(k3, (dim, dim), dtype),
        "proj_b": 0.05 * jax.random.normal(k4, (dim,), dtype),
    }


def prepare_params(params, dim, window_size, num_heads, param_dtype=_MXU_DTYPE):
    """One-time parameter transform (off the per-step hot path):
    fold the attention scale into the q weights, fuse q/kv weights to (C, 3C),
    materialize the masked relative-position bias (h, N, N), and store all of
    it in the MXU operand dtype (bf16) to halve HBM->VMEM traffic."""
    D, H, W = window_size
    N = D * H * W
    interval = H * W
    head_dim = dim // num_heads
    scale = head_dim ** (-0.5)

    # qkv_bias=False in the reference config -> no fused projection bias.
    qkv_w = jnp.concatenate([params["q_w"] * scale, params["kv_w"]], axis=1)

    rpi = params["relative_position_index"]                    # np (N, N)
    table = params["relative_position_bias_table"].astype(jnp.float32)
    bias = table[jnp.asarray(rpi.reshape(-1))].reshape(N, N, num_heads)
    bias = jnp.transpose(bias, (2, 0, 1))                      # (h, N, N)
    frame = np.arange(N) // interval
    self_frame = jnp.asarray(frame[:, None] == frame[None, :])  # (N, N) bool
    bias = jnp.where(self_frame[None], jnp.float32(_NEG_INF), bias)

    return {
        "qkv_w": qkv_w.astype(param_dtype),
        "bias": bias.astype(param_dtype),       # -1e30 is representable in bf16
        "proj_w": params["proj_w"].astype(param_dtype),
        "proj_b": params["proj_b"].reshape(1, dim).astype(param_dtype),
    }


def rwindow_attention_forward(x, prep, window_size, num_heads):
    """rWindowAttention.forward (only_one=False, is_train=True, mask=None, kv=None)."""
    B_, N, C = x.shape
    D, H, W = window_size
    assert N == reduce(mul, window_size)
    assert D >= 2, "temporal window must be >= 2 (otherwise all keys are self-frame-masked)"
    assert C % num_heads == 0
    head_dim = C // num_heads

    vmem_limit = _vmem_limit_bytes()
    BB = _pick_bb(B_, N, C, num_heads,
                  act_bytes=x.dtype.itemsize,
                  param_bytes=prep["qkv_w"].dtype.itemsize,
                  bias_bytes=prep["bias"].dtype.itemsize,
                  budget=vmem_limit)

    out = pl.pallas_call(
        functools.partial(_fused_attn_kernel, num_heads=num_heads,
                          head_dim=head_dim, dim=C),
        out_shape=jax.ShapeDtypeStruct((B_, N, C), x.dtype),
        grid=(B_ // BB,),
        in_specs=[
            pl.BlockSpec((BB, N, C), lambda b: (b, 0, 0)),
            pl.BlockSpec((C, 3 * C), lambda b: (0, 0)),          # VMEM-resident
            pl.BlockSpec((num_heads, N, N), lambda b: (0, 0, 0)),  # VMEM-resident
            pl.BlockSpec((C, C), lambda b: (0, 0)),              # VMEM-resident
            pl.BlockSpec((1, C), lambda b: (0, 0)),
        ],
        out_specs=pl.BlockSpec((BB, N, C), lambda b: (b, 0, 0)),
        scratch_shapes=[pltpu.VMEM((BB, N, C), jnp.float32)],
        compiler_params=pltpu.CompilerParams(
            dimension_semantics=("parallel",),
            vmem_limit_bytes=vmem_limit),
    )(x, prep["qkv_w"], prep["bias"], prep["proj_w"], prep["proj_b"])
    # TODO(synk): the `mask is not None` path, the only_one=True (top-k value
    # gather) path, and the is_train=False attention-map return are not implemented.
    return out


if __name__ == "__main__":
    dim = 32
    num_heads = 2
    window_size = (2, 4, 4)          # (D, H, W) -> N = 32 tokens per window
    B_ = 4                           # num_windows * batch

    key = jax.random.PRNGKey(0)
    kx, kp = jax.random.split(key)
    N = reduce(mul, window_size)
    x = jax.random.normal(kx, (B_, N, dim), jnp.float32)

    params = init_params(kp, dim, window_size, num_heads)
    prep = prepare_params(params, dim, window_size, num_heads)  # one-time, off hot path

    fwd = jax.jit(functools.partial(
        rwindow_attention_forward, window_size=window_size, num_heads=num_heads))
    y = fwd(x, prep)
    jax.block_until_ready(y)
    assert y.shape == (B_, N, dim)
    assert bool(jnp.all(jnp.isfinite(y)))
    print("KERNEL_OK")
</pallas_src>

<mosaic_0001>
module attributes {stable_mosaic.version = 11 : i64} {
  func.func @_fused_attn_kernel(%arg0: i32, %arg1: memref<2x32x32xf32, #tpu.memory_space<vmem>>, %arg2: memref<32x96xbf16, #tpu.memory_space<vmem>>, %arg3: memref<2x32x32xbf16, #tpu.memory_space<vmem>>, %arg4: memref<32x32xbf16, #tpu.memory_space<vmem>>, %arg5: memref<1x32xbf16, #tpu.memory_space<vmem>>, %arg6: memref<2x32x32xf32, #tpu.memory_space<vmem>>, %arg7: memref<2x32x32xf32, #tpu.memory_space<vmem>>) attributes {dimension_semantics = [#tpu.dimension_semantics<parallel>], iteration_bounds = array<i64: 2>, scalar_prefetch = 0 : i64, scratch_operands = 1 : i64, tpu.core_type = #tpu.core_type<tc>, window_params = [{transform_indices = @transform_0, window_bounds = array<i64: 2, 32, 32>}, {pipeline_mode = #tpu.pipeline_mode<synchronous>, transform_indices = @transform_1, window_bounds = array<i64: 32, 96>}, {pipeline_mode = #tpu.pipeline_mode<synchronous>, transform_indices = @transform_2, window_bounds = array<i64: 2, 32, 32>}, {pipeline_mode = #tpu.pipeline_mode<synchronous>, transform_indices = @transform_3, window_bounds = array<i64: 32, 32>}, {pipeline_mode = #tpu.pipeline_mode<synchronous>, transform_indices = @transform_4, window_bounds = array<i64: 1, 32>}, {transform_indices = @transform_5, window_bounds = array<i64: 2, 32, 32>}]} {
    %c0 = arith.constant 0 : index
    %c0_0 = arith.constant 0 : index
    %c0_1 = arith.constant 0 : index
    %0 = vector.load %arg1[%c0, %c0_0, %c0_1] : memref<2x32x32xf32, #tpu.memory_space<vmem>>, vector<2x32x32xf32>
    %1 = vector.shape_cast %0 : vector<2x32x32xf32> to vector<64x32xf32>
    %2 = arith.truncf %1 : vector<64x32xf32> to vector<64x32xbf16>
    %c0_2 = arith.constant 0 : index
    %c0_3 = arith.constant 0 : index
    %3 = vector.load %arg2[%c0_2, %c0_3] : memref<32x96xbf16, #tpu.memory_space<vmem>>, vector<32x96xbf16>
    %cst = arith.constant dense<0.000000e+00> : vector<64x96xf32>
    %4 = tpu.matmul %2, %3, %cst {dimension_numbers = #tpu.dot_dimension_numbers<[1], [0], [0], [1], [0, 0, 1, 1], [], []>} : vector<64x32xbf16>, vector<32x96xbf16>, vector<64x96xf32> -> vector<64x96xf32>
    %5 = arith.truncf %4 : vector<64x96xf32> to vector<64x96xbf16>
    %6 = vector.shape_cast %5 : vector<64x96xbf16> to vector<2x32x96xbf16>
    %c0_4 = arith.constant 0 : index
    %c0_5 = arith.constant 0 : index
    %c0_6 = arith.constant 0 : index
    %7 = vector.load %arg3[%c0_4, %c0_5, %c0_6] : memref<2x32x32xbf16, #tpu.memory_space<vmem>>, vector<2x32x32xbf16>
    %8 = arith.extf %7 : vector<2x32x32xbf16> to vector<2x32x32xf32>
    %9 = vector.extract_strided_slice %6 {offsets = [0, 0, 0], sizes = [2, 32, 16], strides = [1, 1, 1]} : vector<2x32x96xbf16> to vector<2x32x16xbf16>
    %10 = vector.extract_strided_slice %6 {offsets = [0, 0, 32], sizes = [2, 32, 16], strides = [1, 1, 1]} : vector<2x32x96xbf16> to vector<2x32x16xbf16>
    %11 = vector.extract_strided_slice %6 {offsets = [0, 0, 64], sizes = [2, 32, 16], strides = [1, 1, 1]} : vector<2x32x96xbf16> to vector<2x32x16xbf16>
    "tpu.trace_start"() <{level = 10 : i32, message = "bqd,bkd->bqk"}> : () -> ()
    %cst_7 = arith.constant dense<0.000000e+00> : vector<2x32x32xf32>
    %12 = tpu.matmul %9, %10, %cst_7 {dimension_numbers = #tpu.dot_dimension_numbers<[2], [2], [1], [1], [0, 0, 0, 1, 1, 1], [0], [0]>} : vector<2x32x16xbf16>, vector<2x32x16xbf16>, vector<2x32x32xf32> -> vector<2x32x32xf32>
    "tpu.trace_stop"() : () -> ()
    %13 = vector.extract_strided_slice %8 {offsets = [0, 0, 0], sizes = [1, 32, 32], strides = [1, 1, 1]} : vector<2x32x32xf32> to vector<1x32x32xf32>
    %14 = vector.shape_cast %13 : vector<1x32x32xf32> to vector<32x32xf32>
    %15 = vector.shape_cast %14 : vector<32x32xf32> to vector<1x32x32xf32>
    %16 = vector.broadcast %15 : vector<1x32x32xf32> to vector<2x32x32xf32>
    %17 = arith.addf %12, %16 : vector<2x32x32xf32>
    %cst_8 = arith.constant dense<0xFF800000> : vector<2x32xf32>
    %18 = vector.multi_reduction <maximumf>, %17, %cst_8 [2] : vector<2x32x32xf32> to vector<2x32xf32>
    %19 = vector.shape_cast %18 : vector<2x32xf32> to vector<2x32x1xf32>
    %20 = vector.broadcast %19 : vector<2x32x1xf32> to vector<2x32x32xf32>
    %21 = arith.subf %17, %20 : vector<2x32x32xf32>
    %22 = math.exp %21 : vector<2x32x32xf32>
    %cst_9 = arith.constant dense<0.000000e+00> : vector<2x32xf32>
    %23 = vector.multi_reduction <add>, %22, %cst_9 [2] : vector<2x32x32xf32> to vector<2x32xf32>
    %24 = vector.shape_cast %23 : vector<2x32xf32> to vector<2x32x1xf32>
    %25 = tpu.reciprocal %24 {approx = true} : vector<2x32x1xf32> -> vector<2x32x1xf32>
    %26 = vector.broadcast %25 : vector<2x32x1xf32> to vector<2x32x32xf32>
    %27 = arith.mulf %22, %26 : vector<2x32x32xf32>
    %28 = arith.truncf %27 : vector<2x32x32xf32> to vector<2x32x32xbf16>
    "tpu.trace_start"() <{level = 10 : i32, message = "bqk,bkd->bqd"}> : () -> ()
    %cst_10 = arith.constant dense<0.000000e+00> : vector<2x32x16xf32>
    %29 = tpu.matmul %28, %11, %cst_10 {dimension_numbers = #tpu.dot_dimension_numbers<[2], [1], [1], [2], [0, 0, 0, 1, 1, 2], [0], [0]>} : vector<2x32x32xbf16>, vector<2x32x16xbf16>, vector<2x32x16xf32> -> vector<2x32x16xf32>
    "tpu.trace_stop"() : () -> ()
    %c0_11 = arith.constant 0 : index
    %c0_12 = arith.constant 0 : index
    %c0_13 = arith.constant 0 : index
    %30 = vector.load %arg7[%c0_11, %c0_12, %c0_13] : memref<2x32x32xf32, #tpu.memory_space<vmem>>, vector<2x32x16xf32>
    tpu.vector_store %arg7[%c0_11, %c0_12, %c0_13], %29 {strides = array<i32>} : memref<2x32x32xf32, #tpu.memory_space<vmem>>, vector<2x32x16xf32>,
    %31 = vector.extract_strided_slice %6 {offsets = [0, 0, 16], sizes = [2, 32, 16], strides = [1, 1, 1]} : vector<2x32x96xbf16> to vector<2x32x16xbf16>
    %32 = vector.extract_strided_slice %6 {offsets = [0, 0, 48], sizes = [2, 32, 16], strides = [1, 1, 1]} : vector<2x32x96xbf16> to vector<2x32x16xbf16>
    %33 = vector.extract_strided_slice %6 {offsets = [0, 0, 80], sizes = [2, 32, 16], strides = [1, 1, 1]} : vector<2x32x96xbf16> to vector<2x32x16xbf16>
    "tpu.trace_start"() <{level = 10 : i32, message = "bqd,bkd->bqk"}> : () -> ()
    %cst_14 = arith.constant dense<0.000000e+00> : vector<2x32x32xf32>
    %34 = tpu.matmul %31, %32, %cst_14 {dimension_numbers = #tpu.dot_dimension_numbers<[2], [2], [1], [1], [0, 0, 0, 1, 1, 1], [0], [0]>} : vector<2x32x16xbf16>, vector<2x32x16xbf16>, vector<2x32x32xf32> -> vector<2x32x32xf32>
    "tpu.trace_stop"() : () -> ()
    %35 = vector.extract_strided_slice %8 {offsets = [1, 0, 0], sizes = [1, 32, 32], strides = [1, 1, 1]} : vector<2x32x32xf32> to vector<1x32x32xf32>
    %36 = vector.shape_cast %35 : vector<1x32x32xf32> to vector<32x32xf32>
    %37 = vector.shape_cast %36 : vector<32x32xf32> to vector<1x32x32xf32>
    %38 = vector.broadcast %37 : vector<1x32x32xf32> to vector<2x32x32xf32>
    %39 = arith.addf %34, %38 : vector<2x32x32xf32>
    %cst_15 = arith.constant dense<0xFF800000> : vector<2x32xf32>
    %40 = vector.multi_reduction <maximumf>, %39, %cst_15 [2] : vector<2x32x32xf32> to vector<2x32xf32>
    %41 = vector.shape_cast %40 : vector<2x32xf32> to vector<2x32x1xf32>
    %42 = vector.broadcast %41 : vector<2x32x1xf32> to vector<2x32x32xf32>
    %43 = arith.subf %39, %42 : vector<2x32x32xf32>
    %44 = math.exp %43 : vector<2x32x32xf32>
    %cst_16 = arith.constant dense<0.000000e+00> : vector<2x32xf32>
    %45 = vector.multi_reduction <add>, %44, %cst_16 [2] : vector<2x32x32xf32> to vector<2x32xf32>
    %46 = vector.shape_cast %45 : vector<2x32xf32> to vector<2x32x1xf32>
    %47 = tpu.reciprocal %46 {approx = true} : vector<2x32x1xf32> -> vector<2x32x1xf32>
    %48 = vector.broadcast %47 : vector<2x32x1xf32> to vector<2x32x32xf32>
    %49 = arith.mulf %44, %48 : vector<2x32x32xf32>
    %50 = arith.truncf %49 : vector<2x32x32xf32> to vector<2x32x32xbf16>
    "tpu.trace_start"() <{level = 10 : i32, message = "bqk,bkd->bqd"}> : () -> ()
    %cst_17 = arith.constant dense<0.000000e+00> : vector<2x32x16xf32>
    %51 = tpu.matmul %50, %33, %cst_17 {dimension_numbers = #tpu.dot_dimension_numbers<[2], [1], [1], [2], [0, 0, 0, 1, 1, 2], [0], [0]>} : vector<2x32x32xbf16>, vector<2x32x16xbf16>, vector<2x32x16xf32> -> vector<2x32x16xf32>
    "tpu.trace_stop"() : () -> ()
    %c0_18 = arith.constant 0 : index
    %c0_19 = arith.constant 0 : index
    %c16 = arith.constant 16 : index
    %52 = vector.load %arg7[%c0_18, %c0_19, %c16] : memref<2x32x32xf32, #tpu.memory_space<vmem>>, vector<2x32x16xf32>
    tpu.vector_store %arg7[%c0_18, %c0_19, %c16], %51 {strides = array<i32>} : memref<2x32x32xf32, #tpu.memory_space<vmem>>, vector<2x32x16xf32>,
    %c0_20 = arith.constant 0 : index
    %c0_21 = arith.constant 0 : index
    %c0_22 = arith.constant 0 : index
    %53 = vector.load %arg7[%c0_20, %c0_21, %c0_22] : memref<2x32x32xf32, #tpu.memory_space<vmem>>, vector<2x32x32xf32>
    %54 = vector.shape_cast %53 : vector<2x32x32xf32> to vector<64x32xf32>
    %55 = arith.truncf %54 : vector<64x32xf32> to vector<64x32xbf16>
    %c0_23 = arith.constant 0 : index
    %c0_24 = arith.constant 0 : index
    %56 = vector.load %arg4[%c0_23, %c0_24] : memref<32x32xbf16, #tpu.memory_space<vmem>>, vector<32x32xbf16>
    %cst_25 = arith.constant dense<0.000000e+00> : vector<64x32xf32>
    %57 = tpu.matmul %55, %56, %cst_25 {dimension_numbers = #tpu.dot_dimension_numbers<[1], [0], [0], [1], [0, 0, 1, 1], [], []>} : vector<64x32xbf16>, vector<32x32xbf16>, vector<64x32xf32> -> vector<64x32xf32>
    %c0_26 = arith.constant 0 : index
    %c0_27 = arith.constant 0 : index
    %58 = vector.load %arg5[%c0_26, %c0_27] : memref<1x32xbf16, #tpu.memory_space<vmem>>, vector<1x32xbf16>
    %59 = arith.extf %58 : vector<1x32xbf16> to vector<1x32xf32>
    %60 = vector.broadcast %59 : vector<1x32xf32> to vector<64x32xf32>
    %61 = arith.addf %57, %60 : vector<64x32xf32>
    %62 = vector.shape_cast %61 : vector<64x32xf32> to vector<2x32x32xf32>
    %c0_28 = arith.constant 0 : index
    %c0_29 = arith.constant 0 : index
    %c0_30 = arith.constant 0 : index
    %63 = vector.load %arg6[%c0_28, %c0_29, %c0_30] : memref<2x32x32xf32, #tpu.memory_space<vmem>>, vector<2x32x32xf32>
    tpu.vector_store %arg6[%c0_28, %c0_29, %c0_30], %62 {strides = array<i32>} : memref<2x32x32xf32, #tpu.memory_space<vmem>>, vector<2x32x32xf32>,
    return
  }
  func.func @transform_0(%arg0: i32) -> (i32, i32, i32) {
    %c0_i32 = arith.constant 0 : i32
    %c0_i32_0 = arith.constant 0 : i32
    %c0_i32_1 = arith.constant 0 : i32
    return %arg0, %c0_i32, %c0_i32_0 : i32, i32, i32
  }
  func.func @transform_1(%arg0: i32) -> (i32, i32) {
    %c0_i32 = arith.constant 0 : i32
    %c0_i32_0 = arith.constant 0 : i32
    %c0_i32_1 = arith.constant 0 : i32
    return %c0_i32, %c0_i32_0 : i32, i32
  }
  func.func @transform_2(%arg0: i32) -> (i32, i32, i32) {
    %c0_i32 = arith.constant 0 : i32
    %c0_i32_0 = arith.constant 0 : i32
    %c0_i32_1 = arith.constant 0 : i32
    %c0_i32_2 = arith.constant 0 : i32
    return %c0_i32, %c0_i32_0, %c0_i32_1 : i32, i32, i32
  }
  func.func @transform_3(%arg0: i32) -> (i32, i32) {
    %c0_i32 = arith.constant 0 : i32
    %c0_i32_0 = arith.constant 0 : i32
    %c0_i32_1 = arith.constant 0 : i32
    return %c0_i32, %c0_i32_0 : i32, i32
  }
  func.func @transform_4(%arg0: i32) -> (i32, i32) {
    %c0_i32 = arith.constant 0 : i32
    %c0_i32_0 = arith.constant 0 : i32
    %c0_i32_1 = arith.constant 0 : i32
    return %c0_i32, %c0_i32_0 : i32, i32
  }
  func.func @transform_5(%arg0: i32) -> (i32, i32, i32) {
    %c0_i32 = arith.constant 0 : i32
    %c0_i32_0 = arith.constant 0 : i32
    %c0_i32_1 = arith.constant 0 : i32
    return %arg0, %c0_i32, %c0_i32_0 : i32, i32, i32
  }
}

</mosaic_0001>

<llo_original>
// kernel: rwindow_attention_forward.1
$region0: #{rwindow_attention_forward.1}
  #allocation0 [shape = 'u32[]', space=smem, size = 0x4, offset = 0x4, fixed_abs, tag = 'smem constant byte address 0x4 - core index']
  #allocation1 [shape = 'u32[144,128]{1,0:T(1,128)}', space=vmem, size = 0x12000, scoped, tag = 'internal scratch']
  #allocation2 [shape = 'f32[2,32,32]{2,1,0:T(8,128)}', space=vmem, size = 0x8000, scoped, tag = 'scratch operand']
  %s0 = inlined_call_operand.hbm [shape: f32[4,32,32], index: 0, kind: input, shape index: {}]
  %s1 = inlined_call_operand.hbm [shape: bf16[32,96], index: 1, kind: input, shape index: {}]
  %s2 = inlined_call_operand.hbm [shape: bf16[2,32,32], index: 2, kind: input, shape index: {}]
  %s3 = inlined_call_operand.hbm [shape: bf16[32,32], index: 3, kind: input, shape index: {}]
  %s4 = inlined_call_operand.vmem [shape: bf16[1,32], index: 4, kind: input, shape index: {}]
  %s5 = inlined_call_operand.hbm [shape: f32[4,32,32], index: 5, kind: output, shape index: {}]
  %s6 = sld [smem:[#allocation0]]
  $region69: #{rwindow_attention_forward.1} parent=0
    _
  %s8 = ssub.s32 1, %s6
  %s9 = scalar_select 0, %s8, %s6
  $region1: #{rwindow_attention_forward.1} parent=0
    #allocation3 [shape = 'u8[65536]{0}', space=vmem, size = 0x10000, scoped, tag = 'input window, operand 0']
    #allocation4 [shape = 's32[2]{0}', space=sflag, size = 0x8, scoped, tag = 'scoped memory for rwindow_attention_forward.1']
    #allocation5 [shape = 's32[2]{0}', space=sflag, size = 0x8, scoped, tag = 'scoped memory for rwindow_attention_forward.1']
    #allocation6 [shape = 'u8[8192]{0}', space=vmem, size = 0x2000, scoped, tag = 'input window, operand 1, single buffered']
    #allocation7 [shape = 's32[1]{0}', space=sflag, size = 0x4, scoped, tag = 'scoped memory for rwindow_attention_forward.1']
    #allocation8 [shape = 'u8[16384]{0}', space=vmem, size = 0x4000, scoped, tag = 'input window, operand 2, single buffered']
    #allocation9 [shape = 'u8[8192]{0}', space=vmem, size = 0x2000, scoped, tag = 'input window, operand 3, single buffered']
    #allocation10 [shape = 's32[1]{0}', space=sflag, size = 0x4, scoped, tag = 'scoped memory for rwindow_attention_forward.1']
    #allocation11 [shape = 'u8[65536]{0}', space=vmem, size = 0x10000, scoped, tag = 'output window, operand 0']
    %10 = vsyncpa [#allocation4], 0
    %s11 = scalar_lea.sflag [#allocation4], 1
    %12 = vsyncpa %s11, 0
    %13 = vsyncpa [#allocation7], 0
    %14 = vsyncpa [#allocation10], 0
    %15 = vsyncpa [#allocation5], 0
    %s16 = scalar_lea.sflag [#allocation5], 1
    %17 = vsyncpa %s16, 0
    loop: start=0, step=1, limit=4
    $region2: #{rwindow_attention_forward.1} parent=1 // loop_pre_header
      _
    $region3: #{rwindow_attention_forward.1} parent=1 // loop_header
      %s19 = sphi 0, %s23
      %p20 = scmp.ge.s32.totalorder %s19, 4
      %s29 = sphi 0, %s31
      %s32 = sphi 0, %s29
      %s33 = sphi 0, %s32
      %s49 = sphi 0, %s33
      %s53 = sphi 0, %s53
      %s55 = sphi 0, %s53
      %s56 = sphi 0, %s55
      %s70 = sphi 0, %s56
      %s74 = sphi 0, %s74
      %s76 = sphi 0, %s74
      %s77 = sphi 0, %s76
      %s91 = sphi 0, %s77
      %s95 = sphi 0, %s95
      %s97 = sphi 0, %s95
      %s98 = sphi 0, %s97
      %s112 = sphi 0, %s98
      %s116 = sphi 0, %s116
      %s118 = sphi 0, %s116
      %s119 = sphi 0, %s118
      %s133 = sphi 0, %s119
      %s139 = sphi 0, %s141
      %s142 = sphi 0, %s139
      %s143 = sphi 0, %s142
      %s159 = sphi 0, %s143
    $region4: #{rwindow_attention_forward.1} parent=1 // loop_header_branch
      %22 = sbr.rel (%p20) target = $region8
    $region5: #{rwindow_attention_forward.1} parent=1 // loop_body
      %s24 = ssub.s32 %s19, 1
      %s25 = ssub.s32 %s19, 2
      %s26 = sadd.s32 %s19, 1
      %s27 = ssub.s32 %s19, %s26
      %p28 = scmp.eq.s32.totalorder %s27, 0
      %s30 = sadd.s32 %s29, 1
      %s31 = scalar_select %p28, %s29, %s30
      %p34 = pneg %p28
      %p35 = scmp.eq.s32.totalorder %s19, 1
      %p36 = por %p34, %p35
      %p37 = scmp.ne.s32.totalorder %s29, %s32
      %p38 = scmp.eq.s32.totalorder %s19, 0
      %p39 = por %p37, %p38
      %p40 = scmp.ne.s32.totalorder %s29, %s32
      %p41 = scmp.eq.s32.totalorder %s24, 1
      %p42 = por %p40, %p41
      %p43 = scmp.ne.s32.totalorder %s32, %s33
      %p44 = scmp.eq.s32.totalorder %s24, 0
      %p45 = por %p43, %p44
      %p46 = scmp.ne.s32.totalorder %s32, %s33
      %p47 = scmp.eq.s32.totalorder %s25, 1
      %p48 = por %p46, %p47
      %p50 = scmp.ne.s32.totalorder %s33, %s49
      %p51 = scmp.eq.s32.totalorder %s25, 0
      %p52 = por %p50, %p51
      %s54 = sadd.s32 %s53, 1
      %p57 = scmp.eq.s32.totalorder %s19, 1
      %p58 = scmp.ne.s32.totalorder %s53, %s55
      %p59 = scmp.eq.s32.totalorder %s19, 0
      %p60 = por %p58, %p59
      %p61 = scmp.ne.s32.totalorder %s53, %s55
      %p62 = scmp.eq.s32.totalorder %s24, 1
      %p63 = por %p61, %p62
      %p64 = scmp.ne.s32.totalorder %s55, %s56
      %p65 = scmp.eq.s32.totalorder %s24, 0
      %p66 = por %p64, %p65
      %p67 = scmp.ne.s32.totalorder %s55, %s56
      %p68 = scmp.eq.s32.totalorder %s25, 1
      %p69 = por %p67, %p68
      %p71 = scmp.ne.s32.totalorder %s56, %s70
      %p72 = scmp.eq.s32.totalorder %s25, 0
      %p73 = por %p71, %p72
      %s75 = sadd.s32 %s74, 1
      %p78 = scmp.eq.s32.totalorder %s19, 1
      %p79 = scmp.ne.s32.totalorder %s74, %s76
      %p80 = scmp.eq.s32.totalorder %s19, 0
      %p81 = por %p79, %p80
      %p82 = scmp.ne.s32.totalorder %s74, %s76
      %p83 = scmp.eq.s32.totalorder %s24, 1
      %p84 = por %p82, %p83
      %p85 = scmp.ne.s32.totalorder %s76, %s77
      %p86 = scmp.eq.s32.totalorder %s24, 0
      %p87 = por %p85, %p86
      %p88 = scmp.ne.s32.totalorder %s76, %s77
      %p89 = scmp.eq.s32.totalorder %s25, 1
      %p90 = por %p88, %p89
      %p92 = scmp.ne.s32.totalorder %s77, %s91
      %p93 = scmp.eq.s32.totalorder %s25, 0
      %p94 = por %p92, %p93
      %s96 = sadd.s32 %s95, 1
      %p99 = scmp.eq.s32.totalorder %s19, 1
      %p100 = scmp.ne.s32.totalorder %s95, %s97
      %p101 = scmp.eq.s32.totalorder %s19, 0
      %p102 = por %p100, %p101
      %p103 = scmp.ne.s32.totalorder %s95, %s97
      %p104 = scmp.eq.s32.totalorder %s24, 1
      %p105 = por %p103, %p104
      %p106 = scmp.ne.s32.totalorder %s97, %s98
      %p107 = scmp.eq.s32.totalorder %s24, 0
      %p108 = por %p106, %p107
      %p109 = scmp.ne.s32.totalorder %s97, %s98
      %p110 = scmp.eq.s32.totalorder %s25, 1
      %p111 = por %p109, %p110
      %p113 = scmp.ne.s32.totalorder %s98, %s112
      %p114 = scmp.eq.s32.totalorder %s25, 0
      %p115 = por %p113, %p114
      %s117 = sadd.s32 %s116, 1
      %p120 = scmp.eq.s32.totalorder %s19, 1
      %p121 = scmp.ne.s32.totalorder %s116, %s118
      %p122 = scmp.eq.s32.totalorder %s19, 0
      %p123 = por %p121, %p122
      %p124 = scmp.ne.s32.totalorder %s116, %s118
      %p125 = scmp.eq.s32.totalorder %s24, 1
      %p126 = por %p124, %p125
      %p127 = scmp.ne.s32.totalorder %s118, %s119
      %p128 = scmp.eq.s32.totalorder %s24, 0
      %p129 = por %p127, %p128
      %p130 = scmp.ne.s32.totalorder %s118, %s119
      %p131 = scmp.eq.s32.totalorder %s25, 1
      %p132 = por %p130, %p131
      %p134 = scmp.ne.s32.totalorder %s119, %s133
      %p135 = scmp.eq.s32.totalorder %s25, 0
      %p136 = por %p134, %p135
      %s137 = ssub.s32 %s19, %s26
      %p138 = scmp.eq.s32.totalorder %s137, 0
      %s140 = sadd.s32 %s139, 1
      %s141 = scalar_select %p138, %s139, %s140
      %p144 = pneg %p138
      %p145 = scmp.eq.s32.totalorder %s19, 1
      %p146 = por %p144, %p145
      %p147 = scmp.ne.s32.totalorder %s139, %s142
      %p148 = scmp.eq.s32.totalorder %s19, 0
      %p149 = por %p147, %p148
      %p150 = scmp.ne.s32.totalorder %s139, %s142
      %p151 = scmp.eq.s32.totalorder %s24, 1
      %p152 = por %p150, %p151
      %p153 = scmp.ne.s32.totalorder %s142, %s143
      %p154 = scmp.eq.s32.totalorder %s24, 0
      %p155 = por %p153, %p154
      %p156 = scmp.ne.s32.totalorder %s142, %s143
      %p157 = scmp.eq.s32.totalorder %s25, 1
      %p158 = por %p156, %p157
      %p160 = scmp.ne.s32.totalorder %s143, %s159
      %p161 = scmp.eq.s32.totalorder %s25, 0
      %p162 = por %p160, %p161
      %p163 = scmp.le.s32.totalorder 1, %s19
      %p164 = scmp.lt.s32.totalorder %s19, 3
      %p165 = pnand %p163, %p164
      %p166 = pneg %p165
      // Predicated region
      $region9: #{rwindow_attention_forward.1} parent=5 // pred_check
        _
      $region10: #{rwindow_attention_forward.1} parent=5 // pred_check_branch
        %168 = sbr.rel (%p165) target = $region12
      $region11: #{rwindow_attention_forward.1} parent=5 // pred_region
        %s169 = ssub.s32 %s19, 1
        // Predicated region
        $region13: #{rwindow_attention_forward.1} parent=11 // pred_check
          %p170 = pneg %p66
        $region14: #{rwindow_attention_forward.1} parent=11 // pred_check_branch
          %172 = sbr.rel (%p170) target = $region16
        $region15: #{rwindow_attention_forward.1} parent=11 // pred_region
          %s174 = ssub.s32 256, 256
          %175 = vsyncadd [#allocation7], %s174
          %s176 = sshll.u32 [#allocation6], 4
          %s177 = int_to_ptr.vmem [resolvable:$true] %s176
          %182 = dma.hbm_to_vmem [thread:$0]  %s1, 256, %s177, [#allocation7], 64, 64, 4
        $region16: #{rwindow_attention_forward.1} parent=11 // pred_fallthru
          _
        // Predicated region
        $region17: #{rwindow_attention_forward.1} parent=11 // pred_check
          %p183 = pneg %p87
        $region18: #{rwindow_attention_forward.1} parent=11 // pred_check_branch
          %185 = sbr.rel (%p183) target = $region20
        $region19: #{rwindow_attention_forward.1} parent=11 // pred_region
          %s187 = ssub.s32 512, 512
          %188 = vsyncadd [#allocation7], %s187
          %s189 = sshll.u32 [#allocation8], 4
          %s190 = int_to_ptr.vmem [resolvable:$true] %s189
          %195 = dma.hbm_to_vmem [thread:$0]  %s2, 512, %s190, [#allocation7], 64, 64, 4
        $region20: #{rwindow_attention_forward.1} parent=11 // pred_fallthru
          _
        // Predicated region
        $region21: #{rwindow_attention_forward.1} parent=11 // pred_check
          %p196 = pneg %p108
        $region22: #{rwindow_attention_forward.1} parent=11 // pred_check_branch
          %198 = sbr.rel (%p196) target = $region24
        $region23: #{rwindow_attention_forward.1} parent=11 // pred_region
          %s200 = ssub.s32 256, 256
          %201 = vsyncadd [#allocation10], %s200
          %s202 = sshll.u32 [#allocation9], 4
          %s203 = int_to_ptr.vmem [resolvable:$true] %s202
          %208 = dma.hbm_to_vmem [thread:$0]  %s3, 256, %s203, [#allocation10], 64, 64, 4
        $region24: #{rwindow_attention_forward.1} parent=11 // pred_fallthru
          _
        // Predicated region
        $region25: #{rwindow_attention_forward.1} parent=11 // pred_check
          %p209 = pneg %p129
        $region26: #{rwindow_attention_forward.1} parent=11 // pred_check_branch
          %211 = sbr.rel (%p209) target = $region28
        $region27: #{rwindow_attention_forward.1} parent=11 // pred_region
          _
        $region28: #{rwindow_attention_forward.1} parent=11 // pred_fallthru
          _
      $region12: #{rwindow_attention_forward.1} parent=5 // pred_fallthru
        _
      %p212 = scmp.lt.s32.totalorder %s19, 2
      // Predicated region
      $region29: #{rwindow_attention_forward.1} parent=5 // pred_check
        %p213 = pneg %p212
      $region30: #{rwindow_attention_forward.1} parent=5 // pred_check_branch
        %215 = sbr.rel (%p213) target = $region32
      $region31: #{rwindow_attention_forward.1} parent=5 // pred_region
        // Predicated region
        $region33: #{rwindow_attention_forward.1} parent=31 // pred_check
          %p216 = pneg %p39
        $region34: #{rwindow_attention_forward.1} parent=31 // pred_check_branch
          %218 = sbr.rel (%p216) target = $region36
        $region35: #{rwindow_attention_forward.1} parent=31 // pred_region
          %s219 = sand.u32 %s29, 1
          %s220 = scalar_lea.sflag [#allocation4], %s219
          %s221 = sand.u32 %s29, 1
          %s222 = smul.addr %s221, 64
          %s223 = scalar_lea.vmem [#allocation3], %s222
          %s224 = smul.u32 2, %s19
          %s226 = ssub.s32 1024, 1024
          %227 = vsyncadd %s220, %s226
          %s228 = smul.addr %s224, 4
          %s229 = smul.addr %s228, 128
          %s230 = scalar_lea.hbm %s0, %s229
          %s231 = sshll.u32 %s223, 4
          %s232 = int_to_ptr.vmem [resolvable:$true] %s231
          %237 = dma.hbm_to_vmem [thread:$0]  %s230, 1024, %s232, %s220, 128, 128, 8
        $region36: #{rwindow_attention_forward.1} parent=31 // pred_fallthru
          _
      $region32: #{rwindow_attention_forward.1} parent=5 // pred_fallthru
        _
      %p238 = scmp.le.s32.totalorder 1, %s19
      %p239 = scmp.lt.s32.totalorder %s19, 3
      %p240 = pnand %p238, %p239
      %p241 = pneg %p240
      // Predicated region
      $region37: #{rwindow_attention_forward.1} parent=5 // pred_check
        _
      $region38: #{rwindow_attention_forward.1} parent=5 // pred_check_branch
        %243 = sbr.rel (%p240) target = $region40
      $region39: #{rwindow_attention_forward.1} parent=5 // pred_region
        %s244 = ssub.s32 %s19, 1
        %s245 = sand.u32 %s32, 1
        %s246 = scalar_lea.sflag [#allocation4], %s245
        %s247 = sand.u32 %s32, 1
        %s248 = smul.addr %s247, 64
        %s249 = scalar_lea.vmem [#allocation3], %s248
        // Predicated region
        $region41: #{rwindow_attention_forward.1} parent=39 // pred_check
          %p250 = pneg %p45
        $region42: #{rwindow_attention_forward.1} parent=39 // pred_check_branch
          %252 = sbr.rel (%p250) target = $region44
        $region43: #{rwindow_attention_forward.1} parent=39 // pred_region
          %253 = dma.done %s246, 1024
        $region44: #{rwindow_attention_forward.1} parent=39 // pred_fallthru
          _
        // Predicated region
        $region45: #{rwindow_attention_forward.1} parent=39 // pred_check
          %p254 = pneg %p66
        $region46: #{rwindow_attention_forward.1} parent=39 // pred_check_branch
          %256 = sbr.rel (%p254) target = $region48
        $region47: #{rwindow_attention_forward.1} parent=39 // pred_region
          %257 = dma.done [#allocation7], 256
        $region48: #{rwindow_attention_forward.1} parent=39 // pred_fallthru
          _
        // Predicated region
        $region49: #{rwindow_attention_forward.1} parent=39 // pred_check
          %p258 = pneg %p87
        $region50: #{rwindow_attention_forward.1} parent=39 // pred_check_branch
          %260 = sbr.rel (%p258) target = $region52
        $region51: #{rwindow_attention_forward.1} parent=39 // pred_region
          %261 = dma.done [#allocation7], 512
        $region52: #{rwindow_attention_forward.1} parent=39 // pred_fallthru
          _
        // Predicated region
        $region53: #{rwindow_attention_forward.1} parent=39 // pred_check
          %p262 = pneg %p108
        $region54: #{rwindow_attention_forward.1} parent=39 // pred_check_branch
          %264 = sbr.rel (%p262) target = $region56
        $region55: #{rwindow_attention_forward.1} parent=39 // pred_region
          %265 = dma.done [#allocation10], 256
        $region56: #{rwindow_attention_forward.1} parent=39 // pred_fallthru
          _
        %s266 = sand.u32 %s32, 1
        %s267 = scalar_lea.sflag [#allocation4], %s266
        %s268 = sand.u32 %s32, 1
        %s269 = smul.addr %s268, 64
        %s270 = scalar_lea.vmem [#allocation3], %s269
        %p271 = pneg %p45
        %p272 = pneg %p42
        %p273 = pneg %p66
        %p274 = pneg %p63
        %p275 = pneg %p87
        %p276 = pneg %p84
        %p277 = pneg %p108
        %p278 = pneg %p105
        %p279 = pneg %p129
        %p280 = pneg %p126
        %p281 = pneg %p155
        %p282 = pneg %p152
        %s283 = sand.u32 %s142, 1
        %s284 = scalar_lea.sflag [#allocation5], %s283
        %s285 = sand.u32 %s142, 1
        %s286 = smul.addr %s285, 64
        %s287 = scalar_lea.vmem [#allocation11], %s286
        %s288 = smul.u32 2, %s24
        %s289 = smul.u32 2, %s24
        %v291 = vld [vmem:[%s249] sm:$0xff]
        %v292 = vld [vmem:[%s249 + $0x8] sm:$0xff]
        %v293 = vld [vmem:[%s249 + $0x10] sm:$0xff]
        %v294 = vld [vmem:[%s249 + $0x18] sm:$0xff]
        %v295 = vld [vmem:[%s249 + $0x20] sm:$0xff]
        %v296 = vld [vmem:[%s249 + $0x28] sm:$0xff]
        %v297 = vld [vmem:[%s249 + $0x30] sm:$0xff]
        %v298 = vld [vmem:[%s249 + $0x38] sm:$0xff]
        %v299 = vpack.c.bf16 %v292, %v291
        %v300 = vpack.c.bf16 %v294, %v293
        %v301 = vpack.c.bf16 %v296, %v295
        %v302 = vpack.c.bf16 %v298, %v297
        %v303 = vld [vmem:[#allocation6] sm:$0xf]
        %v304 = vld [vmem:[#allocation6 + $0x4] sm:$0xf]
        %v305 = vld [vmem:[#allocation6 + $0x8] sm:$0xf]
        %v306 = vld [vmem:[#allocation6 + $0xc] sm:$0xf]
        %v311 = vunpack.c.l.b16 %v303
        %v312 = vunpack.c.l.b16 %v304
        %v313 = vunpack.c.l.b16 %v305
        %v314 = vunpack.c.l.b16 %v306
        %v315 = vpack.c.b16 %v312, %v311
        %v316 = vpack.c.b16 %v314, %v313
        %vm319 = vcmask 261120
        %v321 = vsel %vm319, %v299, 0
        %v324 = vsel %vm319, %v300, 0
        %v327 = vsel %vm319, %v301, 0
        %v330 = vsel %vm319, %v302, 0
        %332 = vmatprep.subr.bf16.mxu0 0
        %333 = vmatpush1.bf16.msra.mxu0 %v315
        %334 = vmatprep.subr.bf16.mxu0 0
        %335 = vmatpush1.bf16.msra.mxu0 %v316
        %336 = vmatprep.subr.bf16.mxu0 0
        %337 = vmatpush1.bf16.msra.mxu0 0
        %338 = vmatprep.subr.bf16.mxu0 0
        %339 = vmatpush1.bf16.msra.mxu0 0
        %340 = vmatprep.subr.bf16.mxu0 0
        %341 = vmatpush1.bf16.msra.mxu0 0
        %342 = vmatprep.subr.bf16.mxu0 0
        %343 = vmatpush1.bf16.msra.mxu0 0
        %344 = vmatprep.subr.bf16.mxu0 0
        %345 = vmatpush1.bf16.msra.mxu0 0
        %346 = vmatprep.subr.bf16.mxu0 0
        %347 = vmatpush1.bf16.msra.mxu0 0
        %348 = vmatprep.subr.bf16.mxu0 0
        %349 = vmatpush1.bf16.msra.mxu0 0
        %350 = vmatprep.subr.bf16.mxu0 0
        %351 = vmatpush1.bf16.msra.mxu0 0
        %352 = vmatprep.subr.bf16.mxu0 0
        %353 = vmatpush1.bf16.msra.mxu0 0
        %354 = vmatprep.subr.bf16.mxu0 0
        %355 = vmatpush1.bf16.msra.mxu0 0
        %356 = vmatprep.subr.bf16.mxu0 0
        %357 = vmatpush1.bf16.msra.mxu0 0
        %358 = vmatprep.subr.bf16.mxu0 0
        %359 = vmatpush1.bf16.msra.mxu0 0
        %360 = vmatprep.subr.bf16.mxu0 0
        %361 = vmatpush1.bf16.msra.mxu0 0
        %362 = vmatprep.subr.bf16.mxu0 0
        %363 = vmatpush1.bf16.msra.mxu0 0
        %364 = vmatprep.mubr.bf16.mxu0 0
        %365 = vmatmul.mubr.bf16.gmra.mrb[0].mxu0 %v321
        %v366 = vpop.f32.mrb[0].mxu0
        %v367 = vadd.f32 0.0, %v366
        %v368 = vpop.f32.mrb[0].mxu0
        %v369 = vpop.f32.mrb[0].mxu0
        %v370 = vadd.f32 0.0, %v369
        %v371 = vpop.f32.mrb[0].mxu0
        %372 = vmatprep.mubr.bf16.mxu0 0
        %373 = vmatmul.mubr.bf16.gmra.mrb[0].mxu0 %v324
        %v374 = vpop.f32.mrb[0].mxu0
        %v375 = vadd.f32 0.0, %v374
        %v376 = vpop.f32.mrb[0].mxu0
        %v377 = vpop.f32.mrb[0].mxu0
        %v378 = vadd.f32 0.0, %v377
        %v379 = vpop.f32.mrb[0].mxu0
        %380 = vmatprep.mubr.bf16.mxu0 0
        %381 = vmatmul.mubr.bf16.gmra.mrb[0].mxu0 %v327
        %v382 = vpop.f32.mrb[0].mxu0
        %v383 = vadd.f32 0.0, %v382
        %v384 = vpop.f32.mrb[0].mxu0
        %v385 = vpop.f32.mrb[0].mxu0
        %v386 = vadd.f32 0.0, %v385
        %v387 = vpop.f32.mrb[0].mxu0
        %388 = vmatprep.mubr.bf16.mxu0 0
        %389 = vmatmul.mubr.bf16.gmra.mrb[0].mxu0 %v330
        %v390 = vpop.f32.mrb[0].mxu0
        %v391 = vadd.f32 0.0, %v390
        %v392 = vpop.f32.mrb[0].mxu0
        %v393 = vpop.f32.mrb[0].mxu0
        %v394 = vadd.f32 0.0, %v393
        %v395 = vpop.f32.mrb[0].mxu0
        %396 = vdwg.mxu0
        %v397 = vpack.c.bf16 %v370, %v367
        %v398 = vpack.c.bf16 %v378, %v375
        %v399 = vpack.c.bf16 %v386, %v383
        %v400 = vpack.c.bf16 %v394, %v391
        %v401 = vld [vmem:[#allocation8] sm:$0xf]
        %v402 = vld [vmem:[#allocation8 + $0x4] sm:$0xf]
        %v403 = vld [vmem:[#allocation8 + $0x8] sm:$0xf]
        %v404 = vld [vmem:[#allocation8 + $0xc] sm:$0xf]
        %v405 = vld [vmem:[#allocation8 + $0x10] sm:$0xf]
        %v406 = vld [vmem:[#allocation8 + $0x14] sm:$0xf]
        %v407 = vld [vmem:[#allocation8 + $0x18] sm:$0xf]
        %v408 = vld [vmem:[#allocation8 + $0x1c] sm:$0xf]
        %v409 = vunpack.c.l.bf16 %v401
        %v410 = vunpack.c.l.bf16 %v402
        %v411 = vunpack.c.l.bf16 %v403
        %v412 = vunpack.c.l.bf16 %v404
        %v413 = vunpack.c.l.bf16 %v405
        %v414 = vunpack.c.l.bf16 %v406
        %v415 = vunpack.c.l.bf16 %v407
        %v416 = vunpack.c.l.bf16 %v408
        %419 = vrot.lane.b32.xlu0 %v397, 96
        %v420 = vpop.permute.xlu0 %419
        %421 = vrot.lane.b32.xlu0 %v398, 96
        %v422 = vpop.permute.xlu0 %421
        %vm423 = vcmask 130048
        %v425 = vsel %vm423, %v397, 0
        %v428 = vsel %vm423, %v398, 0
        %v431 = vsel %vm423, %v420, 0
        %v434 = vsel %vm423, %v422, 0
        %436 = vmatprep.subr.bf16.mxu0 0
        %437 = vmatpush1.bf16.xpose.msra.mxu0 %v431
        %438 = vmatprep.subr.bf16.mxu0 0
        %439 = vmatpush1.bf16.xpose.msra.mxu0 %v434
        %440 = vmatprep.subr.bf16.mxu0 0
        %441 = vmatpush1.bf16.xpose.msra.mxu0 0
        %442 = vmatprep.subr.bf16.mxu0 0
        %443 = vmatpush1.bf16.xpose.msra.mxu0 0
        %444 = vmatprep.subr.bf16.mxu0 0
        %445 = vmatpush1.bf16.xpose.msra.mxu0 0
        %446 = vmatprep.subr.bf16.mxu0 0
        %447 = vmatpush1.bf16.xpose.msra.mxu0 0
        %448 = vmatprep.subr.bf16.mxu0 0
        %449 = vmatpush1.bf16.xpose.msra.mxu0 0
        %450 = vmatprep.subr.bf16.mxu0 0
        %451 = vmatpush1.bf16.xpose.msra.mxu0 0
        %452 = vmatprep.subr.bf16.mxu0 0
        %453 = vmatpush1.bf16.xpose.msra.mxu0 0
        %454 = vmatprep.subr.bf16.mxu0 0
        %455 = vmatpush1.bf16.xpose.msra.mxu0 0
        %456 = vmatprep.subr.bf16.mxu0 0
        %457 = vmatpush1.bf16.xpose.msra.mxu0 0
        %458 = vmatprep.subr.bf16.mxu0 0
        %459 = vmatpush1.bf16.xpose.msra.mxu0 0
        %460 = vmatprep.subr.bf16.mxu0 0
        %461 = vmatpush1.bf16.xpose.msra.mxu0 0
        %462 = vmatprep.subr.bf16.mxu0 0
        %463 = vmatpush1.bf16.xpose.msra.mxu0 0
        %464 = vmatprep.subr.bf16.mxu0 0
        %465 = vmatpush1.bf16.xpose.msra.mxu0 0
        %466 = vmatprep.subr.bf16.mxu0 0
        %467 = vmatpush1.bf16.xpose.msra.mxu0 0
        %468 = vmatprep.mubr.bf16.mxu0 0
        %469 = vmatmul.mubr.bf16.gmra.mrb[0].mxu0 %v425
        %v470 = vpop.f32.mrb[0].mxu0
        %v471 = vadd.f32 %v409, %v470
        %v472 = vpop.f32.mrb[0].mxu0
        %v473 = vpop.f32.mrb[0].mxu0
        %v474 = vadd.f32 %v410, %v473
        %v475 = vpop.f32.mrb[0].mxu0
        %476 = vmatprep.mubr.bf16.mxu0 0
        %477 = vmatmul.mubr.bf16.gmra.mrb[0].mxu0 %v428
        %v478 = vpop.f32.mrb[0].mxu0
        %v479 = vadd.f32 %v411, %v478
        %v480 = vpop.f32.mrb[0].mxu0
        %v481 = vpop.f32.mrb[0].mxu0
        %v482 = vadd.f32 %v412, %v481
        %v483 = vpop.f32.mrb[0].mxu0
        %484 = vdwg.mxu0
        %487 = vrot.lane.b32.xlu0 %v399, 96
        %v488 = vpop.permute.xlu0 %487
        %489 = vrot.lane.b32.xlu0 %v400, 96
        %v490 = vpop.permute.xlu0 %489
        %v492 = vsel %vm423, %v399, 0
        %v495 = vsel %vm423, %v400, 0
        %v498 = vsel %vm423, %v488, 0
        %v501 = vsel %vm423, %v490, 0
        %503 = vmatprep.subr.bf16.mxu0 0
        %504 = vmatpush1.bf16.xpose.msra.mxu0 %v498
        %505 = vmatprep.subr.bf16.mxu0 0
        %506 = vmatpush1.bf16.xpose.msra.mxu0 %v501
        %507 = vmatprep.subr.bf16.mxu0 0
        %508 = vmatpush1.bf16.xpose.msra.mxu0 0
        %509 = vmatprep.subr.bf16.mxu0 0
        %510 = vmatpush1.bf16.xpose.msra.mxu0 0
        %511 = vmatprep.subr.bf16.mxu0 0
        %512 = vmatpush1.bf16.xpose.msra.mxu0 0
        %513 = vmatprep.subr.bf16.mxu0 0
        %514 = vmatpush1.bf16.xpose.msra.mxu0 0
        %515 = vmatprep.subr.bf16.mxu0 0
        %516 = vmatpush1.bf16.xpose.msra.mxu0 0
        %517 = vmatprep.subr.bf16.mxu0 0
        %518 = vmatpush1.bf16.xpose.msra.mxu0 0
        %519 = vmatprep.subr.bf16.mxu0 0
        %520 = vmatpush1.bf16.xpose.msra.mxu0 0
        %521 = vmatprep.subr.bf16.mxu0 0
        %522 = vmatpush1.bf16.xpose.msra.mxu0 0
        %523 = vmatprep.subr.bf16.mxu0 0
        %524 = vmatpush1.bf16.xpose.msra.mxu0 0
        %525 = vmatprep.subr.bf16.mxu0 0
        %526 = vmatpush1.bf16.xpose.msra.mxu0 0
        %527 = vmatprep.subr.bf16.mxu0 0
        %528 = vmatpush1.bf16.xpose.msra.mxu0 0
        %529 = vmatprep.subr.bf16.mxu0 0
        %530 = vmatpush1.bf16.xpose.msra.mxu0 0
        %531 = vmatprep.subr.bf16.mxu0 0
        %532 = vmatpush1.bf16.xpose.msra.mxu0 0
        %533 = vmatprep.subr.bf16.mxu0 0
        %534 = vmatpush1.bf16.xpose.msra.mxu0 0
        %535 = vmatprep.mubr.bf16.mxu0 0
        %536 = vmatmul.mubr.bf16.gmra.mrb[0].mxu0 %v492
        %v537 = vpop.f32.mrb[0].mxu0
        %v538 = vadd.f32 %v409, %v537
        %v539 = vpop.f32.mrb[0].mxu0
        %v540 = vpop.f32.mrb[0].mxu0
        %v541 = vadd.f32 %v410, %v540
        %v542 = vpop.f32.mrb[0].mxu0
        %543 = vmatprep.mubr.bf16.mxu0 0
        %544 = vmatmul.mubr.bf16.gmra.mrb[0].mxu0 %v495
        %v545 = vpop.f32.mrb[0].mxu0
        %v546 = vadd.f32 %v411, %v545
        %v547 = vpop.f32.mrb[0].mxu0
        %v548 = vpop.f32.mrb[0].mxu0
        %v549 = vadd.f32 %v412, %v548
        %v550 = vpop.f32.mrb[0].mxu0
        %551 = vdwg.mxu0
        %v552 = vsel %vm319, %v471, -inf
        %553 = vmax.xlane.f32.xlu0 %v552
        %v554 = vpop.xlane.xlu0 %553
        %v555 = vsel %vm319, %v474, -inf
        %556 = vmax.xlane.f32.xlu0 %v555
        %v557 = vpop.xlane.xlu0 %556
        %v558 = vsel %vm319, %v479, -inf
        %559 = vmax.xlane.f32.xlu0 %v558
        %v560 = vpop.xlane.xlu0 %559
        %v561 = vsel %vm319, %v482, -inf
        %562 = vmax.xlane.f32.xlu0 %v561
        %v563 = vpop.xlane.xlu0 %562
        %v564 = vsel %vm319, %v538, -inf
        %565 = vmax.xlane.f32.xlu0 %v564
        %v566 = vpop.xlane.xlu0 %565
        %v567 = vsel %vm319, %v541, -inf
        %568 = vmax.xlane.f32.xlu0 %v567
        %v569 = vpop.xlane.xlu0 %568
        %v570 = vsel %vm319, %v546, -inf
        %571 = vmax.xlane.f32.xlu0 %v570
        %v572 = vpop.xlane.xlu0 %571
        %v573 = vsel %vm319, %v549, -inf
        %574 = vmax.xlane.f32.xlu0 %v573
        %v575 = vpop.xlane.xlu0 %574
        %v576 = vsub.f32 %v471, %v554
        %v577 = vsub.f32 %v474, %v557
        %v578 = vsub.f32 %v479, %v560
        %v579 = vsub.f32 %v482, %v563
        %v580 = vsub.f32 %v538, %v566
        %v581 = vsub.f32 %v541, %v569
        %v582 = vsub.f32 %v546, %v572
        %v583 = vsub.f32 %v549, %v575
        %v584 = vmul.f32 %v576, 1.442695
        %v585 = vpow.pop %v584
        %v586 = vmul.f32 %v577, 1.442695
        %v587 = vpow.pop %v586
        %v588 = vmul.f32 %v578, 1.442695
        %v589 = vpow.pop %v588
        %v590 = vmul.f32 %v579, 1.442695
        %v591 = vpow.pop %v590
        %v592 = vmul.f32 %v580, 1.442695
        %v593 = vpow.pop %v592
        %v594 = vmul.f32 %v581, 1.442695
        %v595 = vpow.pop %v594
        %v596 = vmul.f32 %v582, 1.442695
        %v597 = vpow.pop %v596
        %v598 = vmul.f32 %v583, 1.442695
        %v599 = vpow.pop %v598
        %v600 = vsel %vm319, %v585, 0.0
        %601 = vadd.xlane.f32.xlu0 %v600
        %v602 = vpop.xlane.xlu0 %601
        %v603 = vsel %vm319, %v587, 0.0
        %604 = vadd.xlane.f32.xlu0 %v603
        %v605 = vpop.xlane.xlu0 %604
        %v606 = vsel %vm319, %v589, 0.0
        %607 = vadd.xlane.f32.xlu0 %v606
        %v608 = vpop.xlane.xlu0 %607
        %v609 = vsel %vm319, %v591, 0.0
        %610 = vadd.xlane.f32.xlu0 %v609
        %v611 = vpop.xlane.xlu0 %610
        %v612 = vsel %vm319, %v593, 0.0
        %613 = vadd.xlane.f32.xlu0 %v612
        %v614 = vpop.xlane.xlu0 %613
        %v615 = vsel %vm319, %v595, 0.0
        %616 = vadd.xlane.f32.xlu0 %v615
        %v617 = vpop.xlane.xlu0 %616
        %v618 = vsel %vm319, %v597, 0.0
        %619 = vadd.xlane.f32.xlu0 %v618
        %v620 = vpop.xlane.xlu0 %619
        %v621 = vsel %vm319, %v599, 0.0
        %622 = vadd.xlane.f32.xlu0 %v621
        %v623 = vpop.xlane.xlu0 %622
        %v624 = vrcp.pop %v602
        %v625 = vrcp.pop %v605
        %v626 = vrcp.pop %v608
        %v627 = vrcp.pop %v611
        %v628 = vrcp.pop %v614
        %v629 = vrcp.pop %v617
        %v630 = vrcp.pop %v620
        %v631 = vrcp.pop %v623
        %v632 = vmul.f32 %v585, %v624
        %v633 = vmul.f32 %v587, %v625
        %v634 = vmul.f32 %v589, %v626
        %v635 = vmul.f32 %v591, %v627
        %v636 = vmul.f32 %v593, %v628
        %v637 = vmul.f32 %v595, %v629
        %v638 = vmul.f32 %v597, %v630
        %v639 = vmul.f32 %v599, %v631
        %v640 = vpack.c.bf16 %v633, %v632
        %v641 = vpack.c.bf16 %v635, %v634
        %v642 = vpack.c.bf16 %v637, %v636
        %v643 = vpack.c.bf16 %v639, %v638
        %644 = vrot.lane.b32.xlu0 %v397, 64
        %v645 = vpop.permute.xlu0 %644
        %646 = vrot.lane.b32.xlu0 %v398, 64
        %v647 = vpop.permute.xlu0 %646
        %v651 = vsel %vm319, %v640, 0
        %v654 = vsel %vm319, %v641, 0
        %656 = vmatprep.subr.bf16.mxu0 0
        %657 = vmatpush1.bf16.msra.mxu0 %v645
        %658 = vmatprep.subr.bf16.mxu0 0
        %659 = vmatpush1.bf16.msra.mxu0 %v647
        %660 = vmatprep.subr.bf16.mxu0 0
        %661 = vmatpush1.bf16.msra.mxu0 0
        %662 = vmatprep.subr.bf16.mxu0 0
        %663 = vmatpush1.bf16.msra.mxu0 0
        %664 = vmatprep.subr.bf16.mxu0 0
        %665 = vmatpush1.bf16.msra.mxu0 0
        %666 = vmatprep.subr.bf16.mxu0 0
        %667 = vmatpush1.bf16.msra.mxu0 0
        %668 = vmatprep.subr.bf16.mxu0 0
        %669 = vmatpush1.bf16.msra.mxu0 0
        %670 = vmatprep.subr.bf16.mxu0 0
        %671 = vmatpush1.bf16.msra.mxu0 0
        %672 = vmatprep.subr.bf16.mxu0 0
        %673 = vmatpush1.bf16.msra.mxu0 0
        %674 = vmatprep.subr.bf16.mxu0 0
        %675 = vmatpush1.bf16.msra.mxu0 0
        %676 = vmatprep.subr.bf16.mxu0 0
        %677 = vmatpush1.bf16.msra.mxu0 0
        %678 = vmatprep.subr.bf16.mxu0 0
        %679 = vmatpush1.bf16.msra.mxu0 0
        %680 = vmatprep.subr.bf16.mxu0 0
        %681 = vmatpush1.bf16.msra.mxu0 0
        %682 = vmatprep.subr.bf16.mxu0 0
        %683 = vmatpush1.bf16.msra.mxu0 0
        %684 = vmatprep.subr.bf16.mxu0 0
        %685 = vmatpush1.bf16.msra.mxu0 0
        %686 = vmatprep.subr.bf16.mxu0 0
        %687 = vmatpush1.bf16.msra.mxu0 0
        %688 = vmatprep.mubr.bf16.mxu0 0
        %689 = vmatmul.mubr.bf16.gmra.mrb[0].mxu0 %v651
        %v690 = vpop.f32.mrb[0].mxu0
        %v691 = vadd.f32 0.0, %v690
        %v692 = vpop.f32.mrb[0].mxu0
        %v693 = vpop.f32.mrb[0].mxu0
        %v694 = vadd.f32 0.0, %v693
        %v695 = vpop.f32.mrb[0].mxu0
        %696 = vmatprep.mubr.bf16.mxu0 0
        %697 = vmatmul.mubr.bf16.gmra.mrb[0].mxu0 %v654
        %v698 = vpop.f32.mrb[0].mxu0
        %v699 = vadd.f32 0.0, %v698
        %v700 = vpop.f32.mrb[0].mxu0
        %v701 = vpop.f32.mrb[0].mxu0
        %v702 = vadd.f32 0.0, %v701
        %v703 = vpop.f32.mrb[0].mxu0
        %704 = vdwg.mxu0
        %705 = vrot.lane.b32.xlu0 %v399, 64
        %v706 = vpop.permute.xlu0 %705
        %707 = vrot.lane.b32.xlu0 %v400, 64
        %v708 = vpop.permute.xlu0 %707
        %v712 = vsel %vm319, %v642, 0
        %v715 = vsel %vm319, %v643, 0
        %717 = vmatprep.subr.bf16.mxu0 0
        %718 = vmatpush1.bf16.msra.mxu0 %v706
        %719 = vmatprep.subr.bf16.mxu0 0
        %720 = vmatpush1.bf16.msra.mxu0 %v708
        %721 = vmatprep.subr.bf16.mxu0 0
        %722 = vmatpush1.bf16.msra.mxu0 0
        %723 = vmatprep.subr.bf16.mxu0 0
        %724 = vmatpush1.bf16.msra.mxu0 0
        %725 = vmatprep.subr.bf16.mxu0 0
        %726 = vmatpush1.bf16.msra.mxu0 0
        %727 = vmatprep.subr.bf16.mxu0 0
        %728 = vmatpush1.bf16.msra.mxu0 0
        %729 = vmatprep.subr.bf16.mxu0 0
        %730 = vmatpush1.bf16.msra.mxu0 0
        %731 = vmatprep.subr.bf16.mxu0 0
        %732 = vmatpush1.bf16.msra.mxu0 0
        %733 = vmatprep.subr.bf16.mxu0 0
        %734 = vmatpush1.bf16.msra.mxu0 0
        %735 = vmatprep.subr.bf16.mxu0 0
        %736 = vmatpush1.bf16.msra.mxu0 0
        %737 = vmatprep.subr.bf16.mxu0 0
        %738 = vmatpush1.bf16.msra.mxu0 0
        %739 = vmatprep.subr.bf16.mxu0 0
        %740 = vmatpush1.bf16.msra.mxu0 0
        %741 = vmatprep.subr.bf16.mxu0 0
        %742 = vmatpush1.bf16.msra.mxu0 0
        %743 = vmatprep.subr.bf16.mxu0 0
        %744 = vmatpush1.bf16.msra.mxu0 0
        %745 = vmatprep.subr.bf16.mxu0 0
        %746 = vmatpush1.bf16.msra.mxu0 0
        %747 = vmatprep.subr.bf16.mxu0 0
        %748 = vmatpush1.bf16.msra.mxu0 0
        %749 = vmatprep.mubr.bf16.mxu0 0
        %750 = vmatmul.mubr.bf16.gmra.mrb[0].mxu0 %v712
        %v751 = vpop.f32.mrb[0].mxu0
        %v752 = vadd.f32 0.0, %v751
        %v753 = vpop.f32.mrb[0].mxu0
        %v754 = vpop.f32.mrb[0].mxu0
        %v755 = vadd.f32 0.0, %v754
        %v756 = vpop.f32.mrb[0].mxu0
        %757 = vmatprep.mubr.bf16.mxu0 0
        %758 = vmatmul.mubr.bf16.gmra.mrb[0].mxu0 %v715
        %v759 = vpop.f32.mrb[0].mxu0
        %v760 = vadd.f32 0.0, %v759
        %v761 = vpop.f32.mrb[0].mxu0
        %v762 = vpop.f32.mrb[0].mxu0
        %v763 = vadd.f32 0.0, %v762
        %v764 = vpop.f32.mrb[0].mxu0
        %765 = vdwg.mxu0
        %766 = vst.msk [vmem:[#allocation2] sm:$0xff] %vm423, %v691
        %767 = vst.msk [vmem:[#allocation2 + $0x8] sm:$0xff] %vm423, %v694
        %768 = vst.msk [vmem:[#allocation2 + $0x10] sm:$0xff] %vm423, %v699
        %769 = vst.msk [vmem:[#allocation2 + $0x18] sm:$0xff] %vm423, %v702
        %770 = vst.msk [vmem:[#allocation2 + $0x20] sm:$0xff] %vm423, %v752
        %771 = vst.msk [vmem:[#allocation2 + $0x28] sm:$0xff] %vm423, %v755
        %772 = vst.msk [vmem:[#allocation2 + $0x30] sm:$0xff] %vm423, %v760
        %773 = vst.msk [vmem:[#allocation2 + $0x38] sm:$0xff] %vm423, %v763
        %774 = vrot.lane.b32.xlu0 %v397, 112
        %v775 = vpop.permute.xlu0 %774
        %776 = vrot.lane.b32.xlu0 %v398, 112
        %v777 = vpop.permute.xlu0 %776
        %778 = vrot.lane.b32.xlu0 %v397, 80
        %v779 = vpop.permute.xlu0 %778
        %780 = vrot.lane.b32.xlu0 %v398, 80
        %v781 = vpop.permute.xlu0 %780
        %v783 = vsel %vm423, %v775, 0
        %v786 = vsel %vm423, %v777, 0
        %v789 = vsel %vm423, %v779, 0
        %v792 = vsel %vm423, %v781, 0
        %794 = vmatprep.subr.bf16.mxu0 0
        %795 = vmatpush1.bf16.xpose.msra.mxu0 %v789
        %796 = vmatprep.subr.bf16.mxu0 0
        %797 = vmatpush1.bf16.xpose.msra.mxu0 %v792
        %798 = vmatprep.subr.bf16.mxu0 0
        %799 = vmatpush1.bf16.xpose.msra.mxu0 0
        %800 = vmatprep.subr.bf16.mxu0 0
        %801 = vmatpush1.bf16.xpose.msra.mxu0 0
        %802 = vmatprep.subr.bf16.mxu0 0
        %803 = vmatpush1.bf16.xpose.msra.mxu0 0
        %804 = vmatprep.subr.bf16.mxu0 0
        %805 = vmatpush1.bf16.xpose.msra.mxu0 0
        %806 = vmatprep.subr.bf16.mxu0 0
        %807 = vmatpush1.bf16.xpose.msra.mxu0 0
        %808 = vmatprep.subr.bf16.mxu0 0
        %809 = vmatpush1.bf16.xpose.msra.mxu0 0
        %810 = vmatprep.subr.bf16.mxu0 0
        %811 = vmatpush1.bf16.xpose.msra.mxu0 0
        %812 = vmatprep.subr.bf16.mxu0 0
        %813 = vmatpush1.bf16.xpose.msra.mxu0 0
        %814 = vmatprep.subr.bf16.mxu0 0
        %815 = vmatpush1.bf16.xpose.msra.mxu0 0
        %816 = vmatprep.subr.bf16.mxu0 0
        %817 = vmatpush1.bf16.xpose.msra.mxu0 0
        %818 = vmatprep.subr.bf16.mxu0 0
        %819 = vmatpush1.bf16.xpose.msra.mxu0 0
        %820 = vmatprep.subr.bf16.mxu0 0
        %821 = vmatpush1.bf16.xpose.msra.mxu0 0
        %822 = vmatprep.subr.bf16.mxu0 0
        %823 = vmatpush1.bf16.xpose.msra.mxu0 0
        %824 = vmatprep.subr.bf16.mxu0 0
        %825 = vmatpush1.bf16.xpose.msra.mxu0 0
        %826 = vmatprep.mubr.bf16.mxu0 0
        %827 = vmatmul.mubr.bf16.gmra.mrb[0].mxu0 %v783
        %v828 = vpop.f32.mrb[0].mxu0
        %v829 = vadd.f32 %v413, %v828
        %v830 = vpop.f32.mrb[0].mxu0
        %v831 = vpop.f32.mrb[0].mxu0
        %v832 = vadd.f32 %v414, %v831
        %v833 = vpop.f32.mrb[0].mxu0
        %834 = vmatprep.mubr.bf16.mxu0 0
        %835 = vmatmul.mubr.bf16.gmra.mrb[0].mxu0 %v786
        %v836 = vpop.f32.mrb[0].mxu0
        %v837 = vadd.f32 %v415, %v836
        %v838 = vpop.f32.mrb[0].mxu0
        %v839 = vpop.f32.mrb[0].mxu0
        %v840 = vadd.f32 %v416, %v839
        %v841 = vpop.f32.mrb[0].mxu0
        %842 = vdwg.mxu0
        %843 = vrot.lane.b32.xlu0 %v399, 112
        %v844 = vpop.permute.xlu0 %843
        %845 = vrot.lane.b32.xlu0 %v400, 112
        %v846 = vpop.permute.xlu0 %845
        %847 = vrot.lane.b32.xlu0 %v399, 80
        %v848 = vpop.permute.xlu0 %847
        %849 = vrot.lane.b32.xlu0 %v400, 80
        %v850 = vpop.permute.xlu0 %849
        %v852 = vsel %vm423, %v844, 0
        %v855 = vsel %vm423, %v846, 0
        %v858 = vsel %vm423, %v848, 0
        %v861 = vsel %vm423, %v850, 0
        %863 = vmatprep.subr.bf16.mxu0 0
        %864 = vmatpush1.bf16.xpose.msra.mxu0 %v858
        %865 = vmatprep.subr.bf16.mxu0 0
        %866 = vmatpush1.bf16.xpose.msra.mxu0 %v861
        %867 = vmatprep.subr.bf16.mxu0 0
        %868 = vmatpush1.bf16.xpose.msra.mxu0 0
        %869 = vmatprep.subr.bf16.mxu0 0
        %870 = vmatpush1.bf16.xpose.msra.mxu0 0
        %871 = vmatprep.subr.bf16.mxu0 0
        %872 = vmatpush1.bf16.xpose.msra.mxu0 0
        %873 = vmatprep.subr.bf16.mxu0 0
        %874 = vmatpush1.bf16.xpose.msra.mxu0 0
        %875 = vmatprep.subr.bf16.mxu0 0
        %876 = vmatpush1.bf16.xpose.msra.mxu0 0
        %877 = vmatprep.subr.bf16.mxu0 0
        %878 = vmatpush1.bf16.xpose.msra.mxu0 0
        %879 = vmatprep.subr.bf16.mxu0 0
        %880 = vmatpush1.bf16.xpose.msra.mxu0 0
        %881 = vmatprep.subr.bf16.mxu0 0
        %882 = vmatpush1.bf16.xpose.msra.mxu0 0
        %883 = vmatprep.subr.bf16.mxu0 0
        %884 = vmatpush1.bf16.xpose.msra.mxu0 0
        %885 = vmatprep.subr.bf16.mxu0 0
        %886 = vmatpush1.bf16.xpose.msra.mxu0 0
        %887 = vmatprep.subr.bf16.mxu0 0
        %888 = vmatpush1.bf16.xpose.msra.mxu0 0
        %889 = vmatprep.subr.bf16.mxu0 0
        %890 = vmatpush1.bf16.xpose.msra.mxu0 0
        %891 = vmatprep.subr.bf16.mxu0 0
        %892 = vmatpush1.bf16.xpose.msra.mxu0 0
        %893 = vmatprep.subr.bf16.mxu0 0
        %894 = vmatpush1.bf16.xpose.msra.mxu0 0
        %895 = vmatprep.mubr.bf16.mxu0 0
        %896 = vmatmul.mubr.bf16.gmra.mrb[0].mxu0 %v852
        %v897 = vpop.f32.mrb[0].mxu0
        %v898 = vadd.f32 %v413, %v897
        %v899 = vpop.f32.mrb[0].mxu0
        %v900 = vpop.f32.mrb[0].mxu0
        %v901 = vadd.f32 %v414, %v900
        %v902 = vpop.f32.mrb[0].mxu0
        %903 = vmatprep.mubr.bf16.mxu0 0
        %904 = vmatmul.mubr.bf16.gmra.mrb[0].mxu0 %v855
        %v905 = vpop.f32.mrb[0].mxu0
        %v906 = vadd.f32 %v415, %v905
        %v907 = vpop.f32.mrb[0].mxu0
        %v908 = vpop.f32.mrb[0].mxu0
        %v909 = vadd.f32 %v416, %v908
        %v910 = vpop.f32.mrb[0].mxu0
        %911 = vdwg.mxu0
        %v912 = vsel %vm319, %v829, -inf
        %913 = vmax.xlane.f32.xlu0 %v912
        %v914 = vpop.xlane.xlu0 %913
        %v915 = vsel %vm319, %v832, -inf
        %916 = vmax.xlane.f32.xlu0 %v915
        %v917 = vpop.xlane.xlu0 %916
        %v918 = vsel %vm319, %v837, -inf
        %919 = vmax.xlane.f32.xlu0 %v918
        %v920 = vpop.xlane.xlu0 %919
        %v921 = vsel %vm319, %v840, -inf
        %922 = vmax.xlane.f32.xlu0 %v921
        %v923 = vpop.xlane.xlu0 %922
        %v924 = vsel %vm319, %v898, -inf
        %925 = vmax.xlane.f32.xlu0 %v924
        %v926 = vpop.xlane.xlu0 %925
        %v927 = vsel %vm319, %v901, -inf
        %928 = vmax.xlane.f32.xlu0 %v927
        %v929 = vpop.xlane.xlu0 %928
        %v930 = vsel %vm319, %v906, -inf
        %931 = vmax.xlane.f32.xlu0 %v930
        %v932 = vpop.xlane.xlu0 %931
        %v933 = vsel %vm319, %v909, -inf
        %934 = vmax.xlane.f32.xlu0 %v933
        %v935 = vpop.xlane.xlu0 %934
        %v936 = vsub.f32 %v829, %v914
        %v937 = vsub.f32 %v832, %v917
        %v938 = vsub.f32 %v837, %v920
        %v939 = vsub.f32 %v840, %v923
        %v940 = vsub.f32 %v898, %v926
        %v941 = vsub.f32 %v901, %v929
        %v942 = vsub.f32 %v906, %v932
        %v943 = vsub.f32 %v909, %v935
        %v944 = vmul.f32 %v936, 1.442695
        %v945 = vpow.pop %v944
        %v946 = vmul.f32 %v937, 1.442695
        %v947 = vpow.pop %v946
        %v948 = vmul.f32 %v938, 1.442695
        %v949 = vpow.pop %v948
        %v950 = vmul.f32 %v939, 1.442695
        %v951 = vpow.pop %v950
        %v952 = vmul.f32 %v940, 1.442695
        %v953 = vpow.pop %v952
        %v954 = vmul.f32 %v941, 1.442695
        %v955 = vpow.pop %v954
        %v956 = vmul.f32 %v942, 1.442695
        %v957 = vpow.pop %v956
        %v958 = vmul.f32 %v943, 1.442695
        %v959 = vpow.pop %v958
        %v960 = vsel %vm319, %v945, 0.0
        %961 = vadd.xlane.f32.xlu0 %v960
        %v962 = vpop.xlane.xlu0 %961
        %v963 = vsel %vm319, %v947, 0.0
        %964 = vadd.xlane.f32.xlu0 %v963
        %v965 = vpop.xlane.xlu0 %964
        %v966 = vsel %vm319, %v949, 0.0
        %967 = vadd.xlane.f32.xlu0 %v966
        %v968 = vpop.xlane.xlu0 %967
        %v969 = vsel %vm319, %v951, 0.0
        %970 = vadd.xlane.f32.xlu0 %v969
        %v971 = vpop.xlane.xlu0 %970
        %v972 = vsel %vm319, %v953, 0.0
        %973 = vadd.xlane.f32.xlu0 %v972
        %v974 = vpop.xlane.xlu0 %973
        %v975 = vsel %vm319, %v955, 0.0
        %976 = vadd.xlane.f32.xlu0 %v975
        %v977 = vpop.xlane.xlu0 %976
        %v978 = vsel %vm319, %v957, 0.0
        %979 = vadd.xlane.f32.xlu0 %v978
        %v980 = vpop.xlane.xlu0 %979
        %v981 = vsel %vm319, %v959, 0.0
        %982 = vadd.xlane.f32.xlu0 %v981
        %v983 = vpop.xlane.xlu0 %982
        %v984 = vrcp.pop %v962
        %v985 = vrcp.pop %v965
        %v986 = vrcp.pop %v968
        %v987 = vrcp.pop %v971
        %v988 = vrcp.pop %v974
        %v989 = vrcp.pop %v977
        %v990 = vrcp.pop %v980
        %v991 = vrcp.pop %v983
        %v992 = vmul.f32 %v945, %v984
        %v993 = vmul.f32 %v947, %v985
        %v994 = vmul.f32 %v949, %v986
        %v995 = vmul.f32 %v951, %v987
        %v996 = vmul.f32 %v953, %v988
        %v997 = vmul.f32 %v955, %v989
        %v998 = vmul.f32 %v957, %v990
        %v999 = vmul.f32 %v959, %v991
        %v1000 = vpack.c.bf16 %v993, %v992
        %v1001 = vpack.c.bf16 %v995, %v994
        %v1002 = vpack.c.bf16 %v997, %v996
        %v1003 = vpack.c.bf16 %v999, %v998
        %1004 = vrot.lane.b32.xlu0 %v397, 48
        %v1005 = vpop.permute.xlu0 %1004
        %1006 = vrot.lane.b32.xlu0 %v398, 48
        %v1007 = vpop.permute.xlu0 %1006
        %v1011 = vsel %vm319, %v1000, 0
        %v1014 = vsel %vm319, %v1001, 0
        %1016 = vmatprep.subr.bf16.mxu0 0
        %1017 = vmatpush1.bf16.msra.mxu0 %v1005
        %1018 = vmatprep.subr.bf16.mxu0 0
        %1019 = vmatpush1.bf16.msra.mxu0 %v1007
        %1020 = vmatprep.subr.bf16.mxu0 0
        %1021 = vmatpush1.bf16.msra.mxu0 0
        %1022 = vmatprep.subr.bf16.mxu0 0
        %1023 = vmatpush1.bf16.msra.mxu0 0
        %1024 = vmatprep.subr.bf16.mxu0 0
        %1025 = vmatpush1.bf16.msra.mxu0 0
        %1026 = vmatprep.subr.bf16.mxu0 0
        %1027 = vmatpush1.bf16.msra.mxu0 0
        %1028 = vmatprep.subr.bf16.mxu0 0
        %1029 = vmatpush1.bf16.msra.mxu0 0
        %1030 = vmatprep.subr.bf16.mxu0 0
        %1031 = vmatpush1.bf16.msra.mxu0 0
        %1032 = vmatprep.subr.bf16.mxu0 0
        %1033 = vmatpush1.bf16.msra.mxu0 0
        %1034 = vmatprep.subr.bf16.mxu0 0
        %1035 = vmatpush1.bf16.msra.mxu0 0
        %1036 = vmatprep.subr.bf16.mxu0 0
        %1037 = vmatpush1.bf16.msra.mxu0 0
        %1038 = vmatprep.subr.bf16.mxu0 0
        %1039 = vmatpush1.bf16.msra.mxu0 0
        %1040 = vmatprep.subr.bf16.mxu0 0
        %1041 = vmatpush1.bf16.msra.mxu0 0
        %1042 = vmatprep.subr.bf16.mxu0 0
        %1043 = vmatpush1.bf16.msra.mxu0 0
        %1044 = vmatprep.subr.bf16.mxu0 0
        %1045 = vmatpush1.bf16.msra.mxu0 0
        %1046 = vmatprep.subr.bf16.mxu0 0
        %1047 = vmatpush1.bf16.msra.mxu0 0
        %1048 = vmatprep.mubr.bf16.mxu0 0
        %1049 = vmatmul.mubr.bf16.gmra.mrb[0].mxu0 %v1011
        %v1050 = vpop.f32.mrb[0].mxu0
        %v1051 = vadd.f32 0.0, %v1050
        %v1052 = vpop.f32.mrb[0].mxu0
        %v1053 = vpop.f32.mrb[0].mxu0
        %v1054 = vadd.f32 0.0, %v1053
        %v1055 = vpop.f32.mrb[0].mxu0
        %1056 = vmatprep.mubr.bf16.mxu0 0
        %1057 = vmatmul.mubr.bf16.gmra.mrb[0].mxu0 %v1014
        %v1058 = vpop.f32.mrb[0].mxu0
        %v1059 = vadd.f32 0.0, %v1058
        %v1060 = vpop.f32.mrb[0].mxu0
        %v1061 = vpop.f32.mrb[0].mxu0
        %v1062 = vadd.f32 0.0, %v1061
        %v1063 = vpop.f32.mrb[0].mxu0
        %1064 = vdwg.mxu0
        %1065 = vrot.lane.b32.xlu0 %v399, 48
        %v1066 = vpop.permute.xlu0 %1065
        %1067 = vrot.lane.b32.xlu0 %v400, 48
        %v1068 = vpop.permute.xlu0 %1067
        %v1072 = vsel %vm319, %v1002, 0
        %v1075 = vsel %vm319, %v1003, 0
        %1077 = vmatprep.subr.bf16.mxu0 0
        %1078 = vmatpush1.bf16.msra.mxu0 %v1066
        %1079 = vmatprep.subr.bf16.mxu0 0
        %1080 = vmatpush1.bf16.msra.mxu0 %v1068
        %1081 = vmatprep.subr.bf16.mxu0 0
        %1082 = vmatpush1.bf16.msra.mxu0 0
        %1083 = vmatprep.subr.bf16.mxu0 0
        %1084 = vmatpush1.bf16.msra.mxu0 0
        %1085 = vmatprep.subr.bf16.mxu0 0
        %1086 = vmatpush1.bf16.msra.mxu0 0
        %1087 = vmatprep.subr.bf16.mxu0 0
        %1088 = vmatpush1.bf16.msra.mxu0 0
        %1089 = vmatprep.subr.bf16.mxu0 0
        %1090 = vmatpush1.bf16.msra.mxu0 0
        %1091 = vmatprep.subr.bf16.mxu0 0
        %1092 = vmatpush1.bf16.msra.mxu0 0
        %1093 = vmatprep.subr.bf16.mxu0 0
        %1094 = vmatpush1.bf16.msra.mxu0 0
        %1095 = vmatprep.subr.bf16.mxu0 0
        %1096 = vmatpush1.bf16.msra.mxu0 0
        %1097 = vmatprep.subr.bf16.mxu0 0
        %1098 = vmatpush1.bf16.msra.mxu0 0
        %1099 = vmatprep.subr.bf16.mxu0 0
        %1100 = vmatpush1.bf16.msra.mxu0 0
        %1101 = vmatprep.subr.bf16.mxu0 0
        %1102 = vmatpush1.bf16.msra.mxu0 0
        %1103 = vmatprep.subr.bf16.mxu0 0
        %1104 = vmatpush1.bf16.msra.mxu0 0
        %1105 = vmatprep.subr.bf16.mxu0 0
        %1106 = vmatpush1.bf16.msra.mxu0 0
        %1107 = vmatprep.subr.bf16.mxu0 0
        %1108 = vmatpush1.bf16.msra.mxu0 0
        %1109 = vmatprep.mubr.bf16.mxu0 0
        %1110 = vmatmul.mubr.bf16.gmra.mrb[0].mxu0 %v1072
        %v1111 = vpop.f32.mrb[0].mxu0
        %v1112 = vadd.f32 0.0, %v1111
        %v1113 = vpop.f32.mrb[0].mxu0
        %v1114 = vpop.f32.mrb[0].mxu0
        %v1115 = vadd.f32 0.0, %v1114
        %v1116 = vpop.f32.mrb[0].mxu0
        %1117 = vmatprep.mubr.bf16.mxu0 0
        %1118 = vmatmul.mubr.bf16.gmra.mrb[0].mxu0 %v1075
        %v1119 = vpop.f32.mrb[0].mxu0
        %v1120 = vadd.f32 0.0, %v1119
        %v1121 = vpop.f32.mrb[0].mxu0
        %v1122 = vpop.f32.mrb[0].mxu0
        %v1123 = vadd.f32 0.0, %v1122
        %v1124 = vpop.f32.mrb[0].mxu0
        %1125 = vdwg.mxu0
        %1134 = vrot.lane.b32.xlu0 %v1051, 16
        %v1135 = vpop.permute.xlu0 %1134
        %1136 = vrot.lane.b32.xlu0 %v1054, 16
        %v1137 = vpop.permute.xlu0 %1136
        %1138 = vrot.lane.b32.xlu0 %v1059, 16
        %v1139 = vpop.permute.xlu0 %1138
        %1140 = vrot.lane.b32.xlu0 %v1062, 16
        %v1141 = vpop.permute.xlu0 %1140
        %1142 = vrot.lane.b32.xlu0 %v1112, 16
        %v1143 = vpop.permute.xlu0 %1142
        %1144 = vrot.lane.b32.xlu0 %v1115, 16
        %v1145 = vpop.permute.xlu0 %1144
        %1146 = vrot.lane.b32.xlu0 %v1120, 16
        %v1147 = vpop.permute.xlu0 %1146
        %1148 = vrot.lane.b32.xlu0 %v1123, 16
        %v1149 = vpop.permute.xlu0 %1148
        %vm1158 = vcmask 261248
        %1159 = vst.msk [vmem:[#allocation2] sm:$0xff] %vm1158, %v1135
        %1160 = vst.msk [vmem:[#allocation2 + $0x8] sm:$0xff] %vm1158, %v1137
        %1161 = vst.msk [vmem:[#allocation2 + $0x10] sm:$0xff] %vm1158, %v1139
        %1162 = vst.msk [vmem:[#allocation2 + $0x18] sm:$0xff] %vm1158, %v1141
        %1163 = vst.msk [vmem:[#allocation2 + $0x20] sm:$0xff] %vm1158, %v1143
        %1164 = vst.msk [vmem:[#allocation2 + $0x28] sm:$0xff] %vm1158, %v1145
        %1165 = vst.msk [vmem:[#allocation2 + $0x30] sm:$0xff] %vm1158, %v1147
        %1166 = vst.msk [vmem:[#allocation2 + $0x38] sm:$0xff] %vm1158, %v1149
        %v1167 = vld [vmem:[#allocation2] sm:$0xff]
        %v1168 = vld [vmem:[#allocation2 + $0x8] sm:$0xff]
        %v1169 = vld [vmem:[#allocation2 + $0x10] sm:$0xff]
        %v1170 = vld [vmem:[#allocation2 + $0x18] sm:$0xff]
        %v1171 = vld [vmem:[#allocation2 + $0x20] sm:$0xff]
        %v1172 = vld [vmem:[#allocation2 + $0x28] sm:$0xff]
        %v1173 = vld [vmem:[#allocation2 + $0x30] sm:$0xff]
        %v1174 = vld [vmem:[#allocation2 + $0x38] sm:$0xff]
        %v1175 = vpack.c.bf16 %v1168, %v1167
        %v1176 = vpack.c.bf16 %v1170, %v1169
        %v1177 = vpack.c.bf16 %v1172, %v1171
        %v1178 = vpack.c.bf16 %v1174, %v1173
        %v1179 = vld [vmem:[#allocation9] sm:$0xf]
        %v1180 = vld [vmem:[#allocation9 + $0x4] sm:$0xf]
        %v1181 = vld [vmem:[#allocation9 + $0x8] sm:$0xf]
        %v1182 = vld [vmem:[#allocation9 + $0xc] sm:$0xf]
        %v1183 = vld [vmem:[%s4] sm:$0x1]
        %v1184 = vunpack.c.l.bf16 %v1183
        %v1185 = vlaneseq
        %v1186 = vshrl.u32 %v1185, 7
        %v1187 = vsub.s32 0, %v1186
        %v1188 = vrot.slane %v1184, %v1187
        %v1193 = vunpack.c.l.b16 %v1179
        %v1194 = vunpack.c.l.b16 %v1180
        %v1195 = vunpack.c.l.b16 %v1181
        %v1196 = vunpack.c.l.b16 %v1182
        %v1197 = vpack.c.b16 %v1194, %v1193
        %v1198 = vpack.c.b16 %v1196, %v1195
        %v1202 = vsel %vm319, %v1175, 0
        %v1205 = vsel %vm319, %v1176, 0
        %v1208 = vsel %vm319, %v1177, 0
        %v1211 = vsel %vm319, %v1178, 0
        %1213 = vmatprep.subr.bf16.mxu0 0
        %1214 = vmatpush1.bf16.msra.mxu0 %v1197
        %1215 = vmatprep.subr.bf16.mxu0 0
        %1216 = vmatpush1.bf16.msra.mxu0 %v1198
        %1217 = vmatprep.subr.bf16.mxu0 0
        %1218 = vmatpush1.bf16.msra.mxu0 0
        %1219 = vmatprep.subr.bf16.mxu0 0
        %1220 = vmatpush1.bf16.msra.mxu0 0
        %1221 = vmatprep.subr.bf16.mxu0 0
        %1222 = vmatpush1.bf16.msra.mxu0 0
        %1223 = vmatprep.subr.bf16.mxu0 0
        %1224 = vmatpush1.bf16.msra.mxu0 0
        %1225 = vmatprep.subr.bf16.mxu0 0
        %1226 = vmatpush1.bf16.msra.mxu0 0
        %1227 = vmatprep.subr.bf16.mxu0 0
        %1228 = vmatpush1.bf16.msra.mxu0 0
        %1229 = vmatprep.subr.bf16.mxu0 0
        %1230 = vmatpush1.bf16.msra.mxu0 0
        %1231 = vmatprep.subr.bf16.mxu0 0
        %1232 = vmatpush1.bf16.msra.mxu0 0
        %1233 = vmatprep.subr.bf16.mxu0 0
        %1234 = vmatpush1.bf16.msra.mxu0 0
        %1235 = vmatprep.subr.bf16.mxu0 0
        %1236 = vmatpush1.bf16.msra.mxu0 0
        %1237 = vmatprep.subr.bf16.mxu0 0
        %1238 = vmatpush1.bf16.msra.mxu0 0
        %1239 = vmatprep.subr.bf16.mxu0 0
        %1240 = vmatpush1.bf16.msra.mxu0 0
        %1241 = vmatprep.subr.bf16.mxu0 0
        %1242 = vmatpush1.bf16.msra.mxu0 0
        %1243 = vmatprep.subr.bf16.mxu0 0
        %1244 = vmatpush1.bf16.msra.mxu0 0
        %1245 = vmatprep.mubr.bf16.mxu0 0
        %1246 = vmatmul.mubr.bf16.gmra.mrb[0].mxu0 %v1202
        %v1247 = vpop.f32.mrb[0].mxu0
        %v1248 = vadd.f32 %v1188, %v1247
        %v1249 = vpop.f32.mrb[0].mxu0
        %v1250 = vpop.f32.mrb[0].mxu0
        %v1251 = vadd.f32 %v1188, %v1250
        %v1252 = vpop.f32.mrb[0].mxu0
        %1253 = vmatprep.mubr.bf16.mxu0 0
        %1254 = vmatmul.mubr.bf16.gmra.mrb[0].mxu0 %v1205
        %v1255 = vpop.f32.mrb[0].mxu0
        %v1256 = vadd.f32 %v1188, %v1255
        %v1257 = vpop.f32.mrb[0].mxu0
        %v1258 = vpop.f32.mrb[0].mxu0
        %v1259 = vadd.f32 %v1188, %v1258
        %v1260 = vpop.f32.mrb[0].mxu0
        %1261 = vmatprep.mubr.bf16.mxu0 0
        %1262 = vmatmul.mubr.bf16.gmra.mrb[0].mxu0 %v1208
        %v1263 = vpop.f32.mrb[0].mxu0
        %v1264 = vadd.f32 %v1188, %v1263
        %v1265 = vpop.f32.mrb[0].mxu0
        %v1266 = vpop.f32.mrb[0].mxu0
        %v1267 = vadd.f32 %v1188, %v1266
        %v1268 = vpop.f32.mrb[0].mxu0
        %1269 = vmatprep.mubr.bf16.mxu0 0
        %1270 = vmatmul.mubr.bf16.gmra.mrb[0].mxu0 %v1211
        %v1271 = vpop.f32.mrb[0].mxu0
        %v1272 = vadd.f32 %v1188, %v1271
        %v1273 = vpop.f32.mrb[0].mxu0
        %v1274 = vpop.f32.mrb[0].mxu0
        %v1275 = vadd.f32 %v1188, %v1274
        %v1276 = vpop.f32.mrb[0].mxu0
        %1277 = vdwg.mxu0
        %1278 = vst.msk [vmem:[%s287] sm:$0xff] %vm319, %v1248
        %1279 = vst.msk [vmem:[%s287 + $0x8] sm:$0xff] %vm319, %v1251
        %1280 = vst.msk [vmem:[%s287 + $0x10] sm:$0xff] %vm319, %v1256
        %1281 = vst.msk [vmem:[%s287 + $0x18] sm:$0xff] %vm319, %v1259
        %1282 = vst.msk [vmem:[%s287 + $0x20] sm:$0xff] %vm319, %v1264
        %1283 = vst.msk [vmem:[%s287 + $0x28] sm:$0xff] %vm319, %v1267
        %1284 = vst.msk [vmem:[%s287 + $0x30] sm:$0xff] %vm319, %v1272
        %1285 = vst.msk [vmem:[%s287 + $0x38] sm:$0xff] %vm319, %v1275
        %s1286 = sand.u32 %s142, 1
        %s1287 = scalar_lea.sflag [#allocation5], %s1286
        %s1288 = sand.u32 %s142, 1
        %s1289 = smul.addr %s1288, 64
        %s1290 = scalar_lea.vmem [#allocation11], %s1289
        // Predicated region
        $region57: #{rwindow_attention_forward.1} parent=39 // pred_check
          %p1291 = pneg %p152
        $region58: #{rwindow_attention_forward.1} parent=39 // pred_check_branch
          %1293 = sbr.rel (%p1291) target = $region60
        $region59: #{rwindow_attention_forward.1} parent=39 // pred_region
          %s1294 = smul.u32 2, %s24
          %s1296 = ssub.s32 1024, 1024
          %1297 = vsyncadd %s1287, %s1296
          %s1298 = smul.addr %s1294, 4
          %s1299 = smul.addr %s1298, 128
          %s1300 = scalar_lea.hbm %s5, %s1299
          %s1301 = sshll.u32 %s1290, 4
          %s1302 = int_to_ptr.vmem [resolvable:$true] %s1301
          %1307 = dma.vmem_to_hbm [thread:$0]  %s1302, 1024, %s1300, %s1287, 128, 128, 8
        $region60: #{rwindow_attention_forward.1} parent=39 // pred_fallthru
          _
      $region40: #{rwindow_attention_forward.1} parent=5 // pred_fallthru
        _
      %p1308 = scmp.le.s32.totalorder 2, %s19
      // Predicated region
      $region61: #{rwindow_attention_forward.1} parent=5 // pred_check
        %p1309 = pneg %p1308
      $region62: #{rwindow_attention_forward.1} parent=5 // pred_check_branch
        %1311 = sbr.rel (%p1309) target = $region64
      $region63: #{rwindow_attention_forward.1} parent=5 // pred_region
        %s1312 = ssub.s32 %s19, 2
        // Predicated region
        $region65: #{rwindow_attention_forward.1} parent=63 // pred_check
          %p1313 = pneg %p158
        $region66: #{rwindow_attention_forward.1} parent=63 // pred_check_branch
          %1315 = sbr.rel (%p1313) target = $region68
        $region67: #{rwindow_attention_forward.1} parent=63 // pred_region
          %s1316 = sand.u32 %s143, 1
          %s1317 = scalar_lea.sflag [#allocation5], %s1316
          %s1318 = sand.u32 %s143, 1
          %s1319 = smul.addr %s1318, 64
          %s1320 = scalar_lea.vmem [#allocation11], %s1319
          %1321 = dma.done %s1317, 1024
        $region68: #{rwindow_attention_forward.1} parent=63 // pred_fallthru
          _
      $region64: #{rwindow_attention_forward.1} parent=5 // pred_fallthru
        _
    $region6: #{rwindow_attention_forward.1} parent=1 // loop_footer
      %s23 = sadd.s32 1, %s19
    $region7: #{rwindow_attention_forward.1} parent=1 // loop_footer_branch
      %18 = sbr.rel target = $region3
    $region8: #{rwindow_attention_forward.1} parent=1 // loop_exit
      _
    %1322 = vsyncpa [#allocation4], 1
    %s1323 = scalar_lea.sflag [#allocation4], 1
    %1324 = vsyncpa %s1323, 1
    %1325 = vsyncpa [#allocation7], 1
    %1326 = vsyncpa [#allocation10], 1
    %1327 = vsyncpa [#allocation5], 1
    %s1328 = scalar_lea.sflag [#allocation5], 1
    %1329 = vsyncpa %s1328, 1

</llo_original>
